<compile_context>
chip_gen: v7x
topology: tpu7x:2x2x1
jax: 0.10.0
libtpu: 0.0.40
codegen_flags: <defaults>
</compile_context>

<pallas_src>
import functools

import jax
import jax.numpy as jnp
from jax.experimental import pallas as pl
from jax.experimental.pallas import tpu as pltpu

LN_EPS = 1e-5


def _layernorm_f32(x, w, b):
    # torch.nn.LayerNorm semantics: fp32 stats, biased variance, eps=1e-5.
    mu = jnp.mean(x, axis=-1, keepdims=True)
    var = jnp.mean(jnp.square(x - mu), axis=-1, keepdims=True)
    return (x - mu) * jax.lax.rsqrt(var + LN_EPS) * w + b


def transformer_kernel(num_heads, mm_dtype, mlp_chunks,
                       x_ref,
                       ln1w_ref, ln1b_ref, wqkv_ref, bqkv_ref, wo_ref, bo_ref,
                       ln2w_ref, ln2b_ref, wfc_ref, bfc_ref, wproj_ref, bproj_ref,
                       o_ref, xc_ref):
    """One grid step = one ResidualAttentionBlock applied to one batch block.

    grid = (B // Bb, L).  The (Bb, N, C) activation slab lives in the f32 VMEM
    scratch `xc_ref` across all L layers; only weights stream from HBM.
    """
    layer = pl.program_id(1)
    is_f32_mm = jnp.dtype(mm_dtype) == jnp.dtype(jnp.float32)

    @pl.when(layer == 0)
    def _init_carry():
        xc_ref[...] = x_ref[...].astype(jnp.float32)

    x = xc_ref[...]                                   # (Bb, N, C) f32 residual carry
    Bb, N, C = x.shape
    H = num_heads
    hc = C // H
    M = Bb * N

    # Hoisted per-layer parameter loads (one broadcastable row each).
    ln1w, ln1b = ln1w_ref[0], ln1b_ref[0]
    ln2w, ln2b = ln2w_ref[0], ln2b_ref[0]
    bqkv, bo, bproj = bqkv_ref[0], bo_ref[0], bproj_ref[0]

    x2d = x.reshape(M, C)                             # flattened token slab

    # ---------------- attention branch ----------------
    xn = _layernorm_f32(x2d, ln1w, ln1b)
    # in_proj: one (M,C)@(C,3C) MXU matmul; q-scale pre-folded into wqkv/bqkv.
    qkv = jnp.dot(xn.astype(mm_dtype), wqkv_ref[0],
                  preferred_element_type=jnp.float32) + bqkv          # (M, 3C) f32
    qkv = qkv.astype(mm_dtype).reshape(Bb, N, 3 * C)  # single cast, then layout only

    # Head split: lane slices of the Bb-blocked slab (count independent of Bb),
    # stacked into a leading (H*Bb) group axis so attention runs as two batched
    # MXU contractions.
    # TODO(synk): replace slice/stack with a single reshape + (0,2,1,3) transpose
    # (or pltpu.einshape) once non-minor-dim transposes lower reliably in Mosaic.
    q = jnp.stack([qkv[:, :, h * hc:(h + 1) * hc] for h in range(H)], axis=0)
    k = jnp.stack([qkv[:, :, C + h * hc:C + (h + 1) * hc] for h in range(H)], axis=0)
    v = jnp.stack([qkv[:, :, 2 * C + h * hc:2 * C + (h + 1) * hc] for h in range(H)], axis=0)
    q = q.reshape(H * Bb, N, hc)
    k = k.reshape(H * Bb, N, hc)
    v = v.reshape(H * Bb, N, hc)

    s = jnp.einsum('gnd,gmd->gnm', q, k,
                   preferred_element_type=jnp.float32)                # (G, N, N) f32
    s = s - jnp.max(s, axis=-1, keepdims=True)
    p = jnp.exp(s)
    denom = jnp.sum(p, axis=-1, keepdims=True)
    if is_f32_mm:
        p = p / denom                                  # exact path for parity checks
    else:
        p = p * pl.reciprocal(denom, approx=True)      # EUP slot, free-ish
    ctx = jnp.einsum('gnm,gmd->gnd', p.astype(mm_dtype), v,
                     preferred_element_type=jnp.float32)              # (G, N, hc)
    # TODO(synk): for long sequences (N >~ 256 on v7x, 512+ on v5e/v6e) switch
    # to online-softmax (flash) over KV tiles instead of materializing (G,N,N).

    ctx = ctx.astype(mm_dtype).reshape(H, Bb, N, hc)
    ctx = jnp.concatenate([ctx[h] for h in range(H)], axis=-1)        # (Bb, N, C)
    ctx = ctx.reshape(M, C)

    # out_proj: one K=C matmul (full MXU fill) instead of per-head K=hc pieces.
    attn = jnp.dot(ctx, wo_ref[0], preferred_element_type=jnp.float32) + bo
    x2d = x2d + attn

    # ---------------- MLP branch (chunked along the 4C hidden dim) ----------------
    xn2 = _layernorm_f32(x2d, ln2w, ln2b).astype(mm_dtype)
    cs = (4 * C) // mlp_chunks
    mlp = None
    for ci in range(mlp_chunks):                       # static unrolled loop
        c0, c1 = ci * cs, (ci + 1) * cs
        h1 = jnp.dot(xn2, wfc_ref[0, :, c0:c1],
                     preferred_element_type=jnp.float32) + bfc_ref[0, :, c0:c1]
        h1 = h1 * jax.nn.sigmoid(1.702 * h1)           # QuickGELU (EUP)
        contrib = jnp.dot(h1.astype(mm_dtype), wproj_ref[0, c0:c1, :],
                          preferred_element_type=jnp.float32)
        mlp = contrib if mlp is None else mlp + contrib
    x2d = x2d + mlp + bproj

    xnew = x2d.reshape(Bb, N, C)
    xc_ref[...] = xnew

    @pl.when(layer == pl.num_programs(1) - 1)
    def _write_out():
        o_ref[...] = xnew.astype(o_ref.dtype)


# ---------------- wrapper-side sizing helpers ----------------
def _device_vmem_capacity():
    try:
        return int(pltpu.get_tpu_info().vmem_capacity_bytes)
    except Exception:
        return 64 * 2 ** 20        # conservative fallback: v7x per-TensorCore VMEM


def _pick_mlp_chunks(C):
    # Chunk the 4C hidden dim only if each chunk stays a multiple of 128 lanes.
    for nc in (4, 2):
        if (4 * C) % nc == 0 and ((4 * C) // nc) % 128 == 0:
            return nc
    return 1


def _vmem_estimate(bb, N, C, H, x_item, mm_item, mlp_chunks):
    M = bb * N
    cs = (4 * C) // mlp_chunks
    weights = 12 * C * C * mm_item + 13 * C * 4        # one layer's big weights + LN/bias rows
    est = 2 * weights                                  # double-buffered weight pipeline
    est += 2 * 2 * M * C * x_item                      # x / out blocks (double-buffered)
    est += M * C * 4                                   # f32 residual carry scratch
    est += M * 3 * C * (4 + mm_item)                   # qkv (f32 + mm-dtype copy)
    est += 3 * M * C * mm_item                         # q / k / v head stacks
    est += 2 * H * bb * N * N * 4                      # scores + probabilities (f32)
    est += M * C * (4 + mm_item)                       # ctx
    est += 3 * M * cs * 4                              # h1 + QuickGELU temporaries
    est += 5 * M * C * 4                               # xn, attn/mlp partials, residuals
    return est


def _choose_batch_block(B, N, C, H, x_item, mm_item, mlp_chunks,
                        vmem_budget, token_target=512):
    """Pick Bb (a divisor of B) so Bb*N tokens amortize each weight fetch while
    the resident working set still fits the per-core VMEM budget."""
    divisors = [d for d in range(1, B + 1) if B % d == 0]
    candidates = [d for d in divisors if d * N >= token_target]
    bb = candidates[0] if candidates else divisors[-1]
    while bb > 1 and _vmem_estimate(bb, N, C, H, x_item, mm_item, mlp_chunks) > vmem_budget:
        bb = max(d for d in divisors if d < bb)
    return bb


# ---------------- parameter preparation (done ONCE, not per forward) ----------------
def prepare_transformer_params(params, num_heads, matmul_dtype=jnp.bfloat16):
    """Stack per-layer weights along a leading L axis, fold the 1/sqrt(head_dim)
    scale into the q columns of in_proj, and pre-cast the big matmul weights."""
    C = params[0]["ln1_w"].shape[-1]
    hc = C // num_heads
    scale = float(hc) ** -0.5

    def stacked(name, dtype=jnp.float32):
        return jnp.stack([p[name] for p in params], axis=0).astype(dtype)

    qscale = jnp.concatenate([jnp.full((C,), scale, jnp.float32),
                              jnp.ones((2 * C,), jnp.float32)])
    return dict(
        num_heads=int(num_heads),
        ln1w=stacked("ln1_w"), ln1b=stacked("ln1_b"),                 # (L, 1, C) f32
        wqkv=(stacked("wqkv_t") * qscale).astype(matmul_dtype),       # (L, C, 3C)
        bqkv=stacked("bqkv") * qscale,                                # (L, 1, 3C) f32
        wo=stacked("wo_t", matmul_dtype), bo=stacked("bo"),           # (L, C, C), (L,1,C)
        ln2w=stacked("ln2_w"), ln2b=stacked("ln2_b"),                 # (L, 1, C) f32
        wfc=stacked("wfc_t", matmul_dtype), bfc=stacked("bfc"),       # (L, C, 4C), (L,1,4C)
        wproj=stacked("wproj_t", matmul_dtype), bproj=stacked("bproj"),  # (L,4C,C), (L,1,C)
    )


def transformer_forward(x, prepared, size=None):
    """Forward pass of the Transformer (stack of ResidualAttentionBlocks).

    `size` is carried through the PyTorch blocks but unused by
    Attention(attn_type='full'); accepted here for API parity.
    """
    B, N, C = x.shape
    H = prepared["num_heads"]
    L = prepared["wqkv"].shape[0]
    mm_dtype = prepared["wqkv"].dtype
    mm_item = jnp.dtype(mm_dtype).itemsize
    x_item = jnp.dtype(x.dtype).itemsize
    mlp_chunks = _pick_mlp_chunks(C)

    vmem_cap = _device_vmem_capacity()
    bb = _choose_batch_block(B, N, C, H, x_item, mm_item, mlp_chunks,
                             vmem_budget=int(0.85 * vmem_cap))
    est = _vmem_estimate(bb, N, C, H, x_item, mm_item, mlp_chunks)
    vmem_limit = int(min(vmem_cap - (2 << 20), max(int(1.3 * est), 32 << 20)))

    def wspec(a):                                      # per-layer weight: block along L only
        return pl.BlockSpec((1,) + a.shape[1:], lambda b, l: (l, 0, 0))

    x_spec = pl.BlockSpec((bb, N, C), lambda b, l: (b, 0, 0))

    names = ("ln1w", "ln1b", "wqkv", "bqkv", "wo", "bo",
             "ln2w", "ln2b", "wfc", "bfc", "wproj", "bproj")
    weights = [prepared[n] for n in names]
    in_specs = [x_spec] + [wspec(a) for a in weights]

    kernel = functools.partial(transformer_kernel, H, mm_dtype, mlp_chunks)
    # TODO(synk): on v7x (2 TensorCores) split the bb*N token rows across cores
    # within a grid step (core_map) so weights are fetched once per step rather
    # than once per core.
    return pl.pallas_call(
        kernel,
        out_shape=jax.ShapeDtypeStruct((B, N, C), x.dtype),
        grid=(B // bb, L),
        in_specs=in_specs,
        out_specs=x_spec,
        scratch_shapes=[pltpu.VMEM((bb, N, C), jnp.float32)],
        compiler_params=pltpu.CompilerParams(
            dimension_semantics=("parallel", "arbitrary"),
            vmem_limit_bytes=vmem_limit),
    )(x, *weights)


# ---------------- deterministic parameter init (matches module shapes) ----------------
def init_transformer_params(key, width, layers):
    C = width
    params = []
    for l in range(layers):
        ks = jax.random.split(jax.random.fold_in(key, l), 6)
        # Attention.in_proj_weight: xavier_uniform_((3C, C)); bias = 0
        xav = (6.0 / (3 * C + C)) ** 0.5
        in_proj_w = jax.random.uniform(ks[0], (3 * C, C), jnp.float32, -xav, xav)
        in_proj_b = jnp.zeros((3 * C,), jnp.float32)
        # out_proj = nn.Linear(C, C); bias forced to 0 in _reset_parameters
        b1 = 1.0 / (C ** 0.5)
        out_w = jax.random.uniform(ks[1], (C, C), jnp.float32, -b1, b1)
        out_b = jnp.zeros((C,), jnp.float32)
        # MLP: c_fc (4C, C) + bias, c_proj (C, 4C) + bias
        fc_w = jax.random.uniform(ks[2], (4 * C, C), jnp.float32, -b1, b1)
        fc_b = jax.random.uniform(ks[3], (4 * C,), jnp.float32, -b1, b1)
        b2 = 1.0 / ((4 * C) ** 0.5)
        proj_w = jax.random.uniform(ks[4], (C, 4 * C), jnp.float32, -b2, b2)
        proj_b = jax.random.uniform(ks[5], (C,), jnp.float32, -b2, b2)
        params.append(dict(
            ln1_w=jnp.ones((1, C), jnp.float32), ln1_b=jnp.zeros((1, C), jnp.float32),
            wqkv_t=in_proj_w.T, bqkv=in_proj_b.reshape(1, 3 * C),
            wo_t=out_w.T, bo=out_b.reshape(1, C),
            ln2_w=jnp.ones((1, C), jnp.float32), ln2_b=jnp.zeros((1, C), jnp.float32),
            wfc_t=fc_w.T, bfc=fc_b.reshape(1, 4 * C),
            wproj_t=proj_w.T, bproj=proj_b.reshape(1, C),
        ))
    return params


# ---------------- pure-JAX reference (mirrors the PyTorch forward) ----------------
def _ref_layernorm(x, w, b):
    mu = jnp.mean(x, axis=-1, keepdims=True)
    var = jnp.mean((x - mu) ** 2, axis=-1, keepdims=True)
    return (x - mu) / jnp.sqrt(var + LN_EPS) * w[0] + b[0]


def reference_forward(x, params, num_heads):
    B, N, C = x.shape
    hc = C // num_heads
    scale = hc ** -0.5
    for p in params:
        xn = _ref_layernorm(x, p["ln1_w"], p["ln1_b"])
        qkv = xn @ p["wqkv_t"] + p["bqkv"][0]
        q, k, v = jnp.split(qkv, 3, axis=-1)
        q = q.reshape(B, N, num_heads, hc).transpose(0, 2, 1, 3) * scale
        k = k.reshape(B, N, num_heads, hc).transpose(0, 2, 1, 3)
        v = v.reshape(B, N, num_heads, hc).transpose(0, 2, 1, 3)
        attn = jax.nn.softmax(q @ jnp.swapaxes(k, -2, -1), axis=-1)
        o = (attn @ v).transpose(0, 2, 1, 3).reshape(B, N, C)
        x = x + (o @ p["wo_t"] + p["bo"][0])
        xn2 = _ref_layernorm(x, p["ln2_w"], p["ln2_b"])
        h = xn2 @ p["wfc_t"] + p["bfc"][0]
        h = h * jax.nn.sigmoid(1.702 * h)
        x = x + (h @ p["wproj_t"] + p["bproj"][0])
    return x


if __name__ == "__main__":
    B, N, C = 2, 8, 32          # batch, tokens, width
    heads, layers = 4, 2
    size = (4, 2)               # spatial size carried through (unused by full attn)

    key = jax.random.PRNGKey(0)
    kx, kp = jax.random.split(key)
    x = jax.random.normal(kx, (B, N, C), jnp.float32)
    params = init_transformer_params(kp, C, layers)

    ref = reference_forward(x, params, heads)

    # f32-matmul path: tight numerical check against the pure-JAX reference.
    prep_f32 = prepare_transformer_params(params, heads, matmul_dtype=jnp.float32)
    out_f32 = jax.block_until_ready(transformer_forward(x, prep_f32, size))
    assert out_f32.shape == (B, N, C)
    assert jnp.allclose(out_f32, ref, atol=1e-2, rtol=1e-2), "f32 mismatch vs reference"

    # bf16-matmul path (default; the fast path on v5e/v6e/v7x): looser tolerance.
    prep_bf16 = prepare_transformer_params(params, heads, matmul_dtype=jnp.bfloat16)
    out_bf16 = jax.block_until_ready(transformer_forward(x, prep_bf16, size))
    assert out_bf16.shape == (B, N, C)
    assert jnp.allclose(out_bf16, ref, atol=3e-1, rtol=1e-1), "bf16 mismatch vs reference"

    print("KERNEL_OK")
</pallas_src>

<mosaic_0001>
module attributes {stable_mosaic.version = 11 : i64} {
  func.func @transformer_kernel(%arg0: i32, %arg1: i32, %arg2: memref<2x8x32xf32, #tpu.memory_space<vmem>>, %arg3: memref<1x1x32xf32, #tpu.memory_space<vmem>>, %arg4: memref<1x1x32xf32, #tpu.memory_space<vmem>>, %arg5: memref<1x32x96xf32, #tpu.memory_space<vmem>>, %arg6: memref<1x1x96xf32, #tpu.memory_space<vmem>>, %arg7: memref<1x32x32xf32, #tpu.memory_space<vmem>>, %arg8: memref<1x1x32xf32, #tpu.memory_space<vmem>>, %arg9: memref<1x1x32xf32, #tpu.memory_space<vmem>>, %arg10: memref<1x1x32xf32, #tpu.memory_space<vmem>>, %arg11: memref<1x32x128xf32, #tpu.memory_space<vmem>>, %arg12: memref<1x1x128xf32, #tpu.memory_space<vmem>>, %arg13: memref<1x128x32xf32, #tpu.memory_space<vmem>>, %arg14: memref<1x1x32xf32, #tpu.memory_space<vmem>>, %arg15: memref<2x8x32xf32, #tpu.memory_space<vmem>>, %arg16: memref<2x8x32xf32, #tpu.memory_space<vmem>>) attributes {dimension_semantics = [#tpu.dimension_semantics<parallel>, #tpu.dimension_semantics<arbitrary>], iteration_bounds = array<i64: 1, 2>, scalar_prefetch = 0 : i64, scratch_operands = 1 : i64, tpu.core_type = #tpu.core_type<tc>, window_params = [{transform_indices = @transform_0, window_bounds = array<i64: 2, 8, 32>}, {transform_indices = @transform_1, window_bounds = array<i64: 1, 1, 32>}, {transform_indices = @transform_2, window_bounds = array<i64: 1, 1, 32>}, {transform_indices = @transform_3, window_bounds = array<i64: 1, 32, 96>}, {transform_indices = @transform_4, window_bounds = array<i64: 1, 1, 96>}, {transform_indices = @transform_5, window_bounds = array<i64: 1, 32, 32>}, {transform_indices = @transform_6, window_bounds = array<i64: 1, 1, 32>}, {transform_indices = @transform_7, window_bounds = array<i64: 1, 1, 32>}, {transform_indices = @transform_8, window_bounds = array<i64: 1, 1, 32>}, {transform_indices = @transform_9, window_bounds = array<i64: 1, 32, 128>}, {transform_indices = @transform_10, window_bounds = array<i64: 1, 1, 128>}, {transform_indices = @transform_11, window_bounds = array<i64: 1, 128, 32>}, {transform_indices = @transform_12, window_bounds = array<i64: 1, 1, 32>}, {transform_indices = @transform_13, window_bounds = array<i64: 2, 8, 32>}]} {
    %c0_i32 = arith.constant 0 : i32
    %0 = arith.cmpi eq, %arg1, %c0_i32 : i32
    %1 = arith.extui %0 : i1 to i32
    %c0_i32_0 = arith.constant 0 : i32
    %2 = arith.cmpi ne, %1, %c0_i32_0 : i32
    scf.if %2 {
      %c0_62 = arith.constant 0 : index
      %c0_63 = arith.constant 0 : index
      %c0_64 = arith.constant 0 : index
      %153 = vector.load %arg2[%c0_62, %c0_63, %c0_64] : memref<2x8x32xf32, #tpu.memory_space<vmem>>, vector<2x8x32xf32>
      %c0_65 = arith.constant 0 : index
      %c0_66 = arith.constant 0 : index
      %c0_67 = arith.constant 0 : index
      %154 = vector.load %arg16[%c0_65, %c0_66, %c0_67] : memref<2x8x32xf32, #tpu.memory_space<vmem>>, vector<2x8x32xf32>
      tpu.vector_store %arg16[%c0_65, %c0_66, %c0_67], %153 {strides = array<i32>} : memref<2x8x32xf32, #tpu.memory_space<vmem>>, vector<2x8x32xf32>,
    } else {
    }
    %c0 = arith.constant 0 : index
    %c0_1 = arith.constant 0 : index
    %c0_2 = arith.constant 0 : index
    %3 = vector.load %arg16[%c0, %c0_1, %c0_2] : memref<2x8x32xf32, #tpu.memory_space<vmem>>, vector<2x8x32xf32>
    %c0_3 = arith.constant 0 : index
    %c0_4 = arith.constant 0 : index
    %c0_5 = arith.constant 0 : index
    %4 = vector.load %arg3[%c0_3, %c0_4, %c0_5] : memref<1x1x32xf32, #tpu.memory_space<vmem>>, vector<1x1x32xf32>
    %5 = vector.shape_cast %4 : vector<1x1x32xf32> to vector<1x32xf32>
    %c0_6 = arith.constant 0 : index
    %c0_7 = arith.constant 0 : index
    %c0_8 = arith.constant 0 : index
    %6 = vector.load %arg4[%c0_6, %c0_7, %c0_8] : memref<1x1x32xf32, #tpu.memory_space<vmem>>, vector<1x1x32xf32>
    %7 = vector.shape_cast %6 : vector<1x1x32xf32> to vector<1x32xf32>
    %c0_9 = arith.constant 0 : index
    %c0_10 = arith.constant 0 : index
    %c0_11 = arith.constant 0 : index
    %8 = vector.load %arg9[%c0_9, %c0_10, %c0_11] : memref<1x1x32xf32, #tpu.memory_space<vmem>>, vector<1x1x32xf32>
    %9 = vector.shape_cast %8 : vector<1x1x32xf32> to vector<1x32xf32>
    %c0_12 = arith.constant 0 : index
    %c0_13 = arith.constant 0 : index
    %c0_14 = arith.constant 0 : index
    %10 = vector.load %arg10[%c0_12, %c0_13, %c0_14] : memref<1x1x32xf32, #tpu.memory_space<vmem>>, vector<1x1x32xf32>
    %11 = vector.shape_cast %10 : vector<1x1x32xf32> to vector<1x32xf32>
    %c0_15 = arith.constant 0 : index
    %c0_16 = arith.constant 0 : index
    %c0_17 = arith.constant 0 : index
    %12 = vector.load %arg6[%c0_15, %c0_16, %c0_17] : memref<1x1x96xf32, #tpu.memory_space<vmem>>, vector<1x1x96xf32>
    %13 = vector.shape_cast %12 : vector<1x1x96xf32> to vector<1x96xf32>
    %c0_18 = arith.constant 0 : index
    %c0_19 = arith.constant 0 : index
    %c0_20 = arith.constant 0 : index
    %14 = vector.load %arg8[%c0_18, %c0_19, %c0_20] : memref<1x1x32xf32, #tpu.memory_space<vmem>>, vector<1x1x32xf32>
    %15 = vector.shape_cast %14 : vector<1x1x32xf32> to vector<1x32xf32>
    %c0_21 = arith.constant 0 : index
    %c0_22 = arith.constant 0 : index
    %c0_23 = arith.constant 0 : index
    %16 = vector.load %arg14[%c0_21, %c0_22, %c0_23] : memref<1x1x32xf32, #tpu.memory_space<vmem>>, vector<1x1x32xf32>
    %17 = vector.shape_cast %16 : vector<1x1x32xf32> to vector<1x32xf32>
    %18 = vector.shape_cast %3 : vector<2x8x32xf32> to vector<16x32xf32>
    %cst = arith.constant dense<0.000000e+00> : vector<16xf32>
    %19 = vector.multi_reduction <add>, %18, %cst [1] : vector<16x32xf32> to vector<16xf32>
    %20 = vector.shape_cast %19 : vector<16xf32> to vector<16x1xf32>
    %cst_24 = arith.constant 3.200000e+01 : f32
    %21 = vector.broadcast %cst_24 : f32 to vector<16x1xf32>
    %22 = arith.divf %20, %21 : vector<16x1xf32>
    %23 = vector.broadcast %22 : vector<16x1xf32> to vector<16x32xf32>
    %24 = arith.subf %18, %23 : vector<16x32xf32>
    %25 = arith.mulf %24, %24 : vector<16x32xf32>
    %cst_25 = arith.constant dense<0.000000e+00> : vector<16xf32>
    %26 = vector.multi_reduction <add>, %25, %cst_25 [1] : vector<16x32xf32> to vector<16xf32>
    %27 = vector.shape_cast %26 : vector<16xf32> to vector<16x1xf32>
    %cst_26 = arith.constant 3.200000e+01 : f32
    %28 = vector.broadcast %cst_26 : f32 to vector<16x1xf32>
    %29 = arith.divf %27, %28 : vector<16x1xf32>
    %30 = vector.broadcast %22 : vector<16x1xf32> to vector<16x32xf32>
    %31 = arith.subf %18, %30 : vector<16x32xf32>
    %cst_27 = arith.constant 9.99999974E-6 : f32
    %32 = vector.broadcast %cst_27 : f32 to vector<16x1xf32>
    %33 = arith.addf %29, %32 : vector<16x1xf32>
    %34 = math.rsqrt %33 : vector<16x1xf32>
    %35 = vector.broadcast %34 : vector<16x1xf32> to vector<16x32xf32>
    %36 = arith.mulf %31, %35 : vector<16x32xf32>
    %37 = vector.broadcast %5 : vector<1x32xf32> to vector<16x32xf32>
    %38 = arith.mulf %36, %37 : vector<16x32xf32>
    %39 = vector.broadcast %7 : vector<1x32xf32> to vector<16x32xf32>
    %40 = arith.addf %38, %39 : vector<16x32xf32>
    %c0_28 = arith.constant 0 : index
    %c0_29 = arith.constant 0 : index
    %c0_30 = arith.constant 0 : index
    %41 = vector.load %arg5[%c0_28, %c0_29, %c0_30] : memref<1x32x96xf32, #tpu.memory_space<vmem>>, vector<1x32x96xf32>
    %42 = vector.shape_cast %41 : vector<1x32x96xf32> to vector<32x96xf32>
    %cst_31 = arith.constant dense<0.000000e+00> : vector<16x96xf32>
    %43 = tpu.matmul %40, %42, %cst_31 {dimension_numbers = #tpu.dot_dimension_numbers<[1], [0], [0], [1], [0, 0, 1, 1], [], []>} : vector<16x32xf32>, vector<32x96xf32>, vector<16x96xf32> -> vector<16x96xf32>
    %44 = vector.broadcast %13 : vector<1x96xf32> to vector<16x96xf32>
    %45 = arith.addf %43, %44 : vector<16x96xf32>
    %46 = vector.shape_cast %45 : vector<16x96xf32> to vector<2x8x96xf32>
    %47 = vector.extract_strided_slice %46 {offsets = [0, 0, 0], sizes = [2, 8, 8], strides = [1, 1, 1]} : vector<2x8x96xf32> to vector<2x8x8xf32>
    %48 = vector.extract_strided_slice %46 {offsets = [0, 0, 8], sizes = [2, 8, 8], strides = [1, 1, 1]} : vector<2x8x96xf32> to vector<2x8x8xf32>
    %49 = vector.extract_strided_slice %46 {offsets = [0, 0, 16], sizes = [2, 8, 8], strides = [1, 1, 1]} : vector<2x8x96xf32> to vector<2x8x8xf32>
    %50 = vector.extract_strided_slice %46 {offsets = [0, 0, 24], sizes = [2, 8, 8], strides = [1, 1, 1]} : vector<2x8x96xf32> to vector<2x8x8xf32>
    %51 = vector.shape_cast %47 : vector<2x8x8xf32> to vector<1x2x8x8xf32>
    %52 = vector.shape_cast %48 : vector<2x8x8xf32> to vector<1x2x8x8xf32>
    %53 = vector.shape_cast %49 : vector<2x8x8xf32> to vector<1x2x8x8xf32>
    %54 = vector.shape_cast %50 : vector<2x8x8xf32> to vector<1x2x8x8xf32>
    %55 = tpu.concatenate %51, %52, %53, %54 in 0 : vector<1x2x8x8xf32>, vector<1x2x8x8xf32>, vector<1x2x8x8xf32>, vector<1x2x8x8xf32> -> vector<4x2x8x8xf32>
    %56 = vector.extract_strided_slice %46 {offsets = [0, 0, 32], sizes = [2, 8, 8], strides = [1, 1, 1]} : vector<2x8x96xf32> to vector<2x8x8xf32>
    %57 = vector.extract_strided_slice %46 {offsets = [0, 0, 40], sizes = [2, 8, 8], strides = [1, 1, 1]} : vector<2x8x96xf32> to vector<2x8x8xf32>
    %58 = vector.extract_strided_slice %46 {offsets = [0, 0, 48], sizes = [2, 8, 8], strides = [1, 1, 1]} : vector<2x8x96xf32> to vector<2x8x8xf32>
    %59 = vector.extract_strided_slice %46 {offsets = [0, 0, 56], sizes = [2, 8, 8], strides = [1, 1, 1]} : vector<2x8x96xf32> to vector<2x8x8xf32>
    %60 = vector.shape_cast %56 : vector<2x8x8xf32> to vector<1x2x8x8xf32>
    %61 = vector.shape_cast %57 : vector<2x8x8xf32> to vector<1x2x8x8xf32>
    %62 = vector.shape_cast %58 : vector<2x8x8xf32> to vector<1x2x8x8xf32>
    %63 = vector.shape_cast %59 : vector<2x8x8xf32> to vector<1x2x8x8xf32>
    %64 = tpu.concatenate %60, %61, %62, %63 in 0 : vector<1x2x8x8xf32>, vector<1x2x8x8xf32>, vector<1x2x8x8xf32>, vector<1x2x8x8xf32> -> vector<4x2x8x8xf32>
    %65 = vector.extract_strided_slice %46 {offsets = [0, 0, 64], sizes = [2, 8, 8], strides = [1, 1, 1]} : vector<2x8x96xf32> to vector<2x8x8xf32>
    %66 = vector.extract_strided_slice %46 {offsets = [0, 0, 72], sizes = [2, 8, 8], strides = [1, 1, 1]} : vector<2x8x96xf32> to vector<2x8x8xf32>
    %67 = vector.extract_strided_slice %46 {offsets = [0, 0, 80], sizes = [2, 8, 8], strides = [1, 1, 1]} : vector<2x8x96xf32> to vector<2x8x8xf32>
    %68 = vector.extract_strided_slice %46 {offsets = [0, 0, 88], sizes = [2, 8, 8], strides = [1, 1, 1]} : vector<2x8x96xf32> to vector<2x8x8xf32>
    %69 = vector.shape_cast %65 : vector<2x8x8xf32> to vector<1x2x8x8xf32>
    %70 = vector.shape_cast %66 : vector<2x8x8xf32> to vector<1x2x8x8xf32>
    %71 = vector.shape_cast %67 : vector<2x8x8xf32> to vector<1x2x8x8xf32>
    %72 = vector.shape_cast %68 : vector<2x8x8xf32> to vector<1x2x8x8xf32>
    %73 = tpu.concatenate %69, %70, %71, %72 in 0 : vector<1x2x8x8xf32>, vector<1x2x8x8xf32>, vector<1x2x8x8xf32>, vector<1x2x8x8xf32> -> vector<4x2x8x8xf32>
    %74 = vector.shape_cast %55 : vector<4x2x8x8xf32> to vector<8x8x8xf32>
    %75 = vector.shape_cast %64 : vector<4x2x8x8xf32> to vector<8x8x8xf32>
    %76 = vector.shape_cast %73 : vector<4x2x8x8xf32> to vector<8x8x8xf32>
    "tpu.trace_start"() <{level = 10 : i32, message = "gnd,gmd->gnm"}> : () -> ()
    %cst_32 = arith.constant dense<0.000000e+00> : vector<8x8x8xf32>
    %77 = tpu.matmul %74, %75, %cst_32 {dimension_numbers = #tpu.dot_dimension_numbers<[2], [2], [1], [1], [0, 0, 0, 1, 1, 1], [0], [0]>} : vector<8x8x8xf32>, vector<8x8x8xf32>, vector<8x8x8xf32> -> vector<8x8x8xf32>
    "tpu.trace_stop"() : () -> ()
    %cst_33 = arith.constant dense<0xFF800000> : vector<8x8xf32>
    %78 = vector.multi_reduction <maximumf>, %77, %cst_33 [2] : vector<8x8x8xf32> to vector<8x8xf32>
    %79 = vector.shape_cast %78 : vector<8x8xf32> to vector<8x8x1xf32>
    %80 = vector.broadcast %79 : vector<8x8x1xf32> to vector<8x8x8xf32>
    %81 = arith.subf %77, %80 : vector<8x8x8xf32>
    %82 = math.exp %81 : vector<8x8x8xf32>
    %cst_34 = arith.constant dense<0.000000e+00> : vector<8x8xf32>
    %83 = vector.multi_reduction <add>, %82, %cst_34 [2] : vector<8x8x8xf32> to vector<8x8xf32>
    %84 = vector.shape_cast %83 : vector<8x8xf32> to vector<8x8x1xf32>
    %85 = vector.broadcast %84 : vector<8x8x1xf32> to vector<8x8x8xf32>
    %86 = arith.divf %82, %85 : vector<8x8x8xf32>
    "tpu.trace_start"() <{level = 10 : i32, message = "gnm,gmd->gnd"}> : () -> ()
    %cst_35 = arith.constant dense<0.000000e+00> : vector<8x8x8xf32>
    %87 = tpu.matmul %86, %76, %cst_35 {dimension_numbers = #tpu.dot_dimension_numbers<[2], [1], [1], [2], [0, 0, 0, 1, 1, 2], [0], [0]>} : vector<8x8x8xf32>, vector<8x8x8xf32>, vector<8x8x8xf32> -> vector<8x8x8xf32>
    "tpu.trace_stop"() : () -> ()
    %88 = vector.shape_cast %87 : vector<8x8x8xf32> to vector<4x2x8x8xf32>
    %89 = vector.extract_strided_slice %88 {offsets = [0, 0, 0, 0], sizes = [1, 2, 8, 8], strides = [1, 1, 1, 1]} : vector<4x2x8x8xf32> to vector<1x2x8x8xf32>
    %90 = vector.shape_cast %89 : vector<1x2x8x8xf32> to vector<2x8x8xf32>
    %91 = vector.extract_strided_slice %88 {offsets = [1, 0, 0, 0], sizes = [1, 2, 8, 8], strides = [1, 1, 1, 1]} : vector<4x2x8x8xf32> to vector<1x2x8x8xf32>
    %92 = vector.shape_cast %91 : vector<1x2x8x8xf32> to vector<2x8x8xf32>
    %93 = vector.extract_strided_slice %88 {offsets = [2, 0, 0, 0], sizes = [1, 2, 8, 8], strides = [1, 1, 1, 1]} : vector<4x2x8x8xf32> to vector<1x2x8x8xf32>
    %94 = vector.shape_cast %93 : vector<1x2x8x8xf32> to vector<2x8x8xf32>
    %95 = vector.extract_strided_slice %88 {offsets = [3, 0, 0, 0], sizes = [1, 2, 8, 8], strides = [1, 1, 1, 1]} : vector<4x2x8x8xf32> to vector<1x2x8x8xf32>
    %96 = vector.shape_cast %95 : vector<1x2x8x8xf32> to vector<2x8x8xf32>
    %97 = tpu.concatenate %90, %92, %94, %96 in 2 : vector<2x8x8xf32>, vector<2x8x8xf32>, vector<2x8x8xf32>, vector<2x8x8xf32> -> vector<2x8x32xf32>
    %98 = vector.shape_cast %97 : vector<2x8x32xf32> to vector<16x32xf32>
    %c0_36 = arith.constant 0 : index
    %c0_37 = arith.constant 0 : index
    %c0_38 = arith.constant 0 : index
    %99 = vector.load %arg7[%c0_36, %c0_37, %c0_38] : memref<1x32x32xf32, #tpu.memory_space<vmem>>, vector<1x32x32xf32>
    %100 = vector.shape_cast %99 : vector<1x32x32xf32> to vector<32x32xf32>
    %cst_39 = arith.constant dense<0.000000e+00> : vector<16x32xf32>
    %101 = tpu.matmul %98, %100, %cst_39 {dimension_numbers = #tpu.dot_dimension_numbers<[1], [0], [0], [1], [0, 0, 1, 1], [], []>} : vector<16x32xf32>, vector<32x32xf32>, vector<16x32xf32> -> vector<16x32xf32>
    %102 = vector.broadcast %15 : vector<1x32xf32> to vector<16x32xf32>
    %103 = arith.addf %101, %102 : vector<16x32xf32>
    %104 = arith.addf %18, %103 : vector<16x32xf32>
    %cst_40 = arith.constant dense<0.000000e+00> : vector<16xf32>
    %105 = vector.multi_reduction <add>, %104, %cst_40 [1] : vector<16x32xf32> to vector<16xf32>
    %106 = vector.shape_cast %105 : vector<16xf32> to vector<16x1xf32>
    %cst_41 = arith.constant 3.200000e+01 : f32
    %107 = vector.broadcast %cst_41 : f32 to vector<16x1xf32>
    %108 = arith.divf %106, %107 : vector<16x1xf32>
    %109 = vector.broadcast %108 : vector<16x1xf32> to vector<16x32xf32>
    %110 = arith.subf %104, %109 : vector<16x32xf32>
    %111 = arith.mulf %110, %110 : vector<16x32xf32>
    %cst_42 = arith.constant dense<0.000000e+00> : vector<16xf32>
    %112 = vector.multi_reduction <add>, %111, %cst_42 [1] : vector<16x32xf32> to vector<16xf32>
    %113 = vector.shape_cast %112 : vector<16xf32> to vector<16x1xf32>
    %cst_43 = arith.constant 3.200000e+01 : f32
    %114 = vector.broadcast %cst_43 : f32 to vector<16x1xf32>
    %115 = arith.divf %113, %114 : vector<16x1xf32>
    %116 = vector.broadcast %108 : vector<16x1xf32> to vector<16x32xf32>
    %117 = arith.subf %104, %116 : vector<16x32xf32>
    %cst_44 = arith.constant 9.99999974E-6 : f32
    %118 = vector.broadcast %cst_44 : f32 to vector<16x1xf32>
    %119 = arith.addf %115, %118 : vector<16x1xf32>
    %120 = math.rsqrt %119 : vector<16x1xf32>
    %121 = vector.broadcast %120 : vector<16x1xf32> to vector<16x32xf32>
    %122 = arith.mulf %117, %121 : vector<16x32xf32>
    %123 = vector.broadcast %9 : vector<1x32xf32> to vector<16x32xf32>
    %124 = arith.mulf %122, %123 : vector<16x32xf32>
    %125 = vector.broadcast %11 : vector<1x32xf32> to vector<16x32xf32>
    %126 = arith.addf %124, %125 : vector<16x32xf32>
    %c0_45 = arith.constant 0 : index
    %c0_46 = arith.constant 0 : index
    %c0_47 = arith.constant 0 : index
    %127 = vector.load %arg11[%c0_45, %c0_46, %c0_47] : memref<1x32x128xf32, #tpu.memory_space<vmem>>, vector<1x32x128xf32>
    %128 = vector.shape_cast %127 : vector<1x32x128xf32> to vector<32x128xf32>
    %cst_48 = arith.constant dense<0.000000e+00> : vector<16x128xf32>
    %129 = tpu.matmul %126, %128, %cst_48 {dimension_numbers = #tpu.dot_dimension_numbers<[1], [0], [0], [1], [0, 0, 1, 1], [], []>} : vector<16x32xf32>, vector<32x128xf32>, vector<16x128xf32> -> vector<16x128xf32>
    %c0_49 = arith.constant 0 : index
    %c0_50 = arith.constant 0 : index
    %c0_51 = arith.constant 0 : index
    %130 = vector.load %arg12[%c0_49, %c0_50, %c0_51] : memref<1x1x128xf32, #tpu.memory_space<vmem>>, vector<1x1x128xf32>
    %131 = vector.shape_cast %130 : vector<1x1x128xf32> to vector<1x128xf32>
    %132 = vector.broadcast %131 : vector<1x128xf32> to vector<16x128xf32>
    %133 = arith.addf %129, %132 : vector<16x128xf32>
    %cst_52 = arith.constant 1.702000e+00 : f32
    %134 = vector.broadcast %cst_52 : f32 to vector<16x128xf32>
    %135 = arith.mulf %134, %133 : vector<16x128xf32>
    %136 = arith.negf %135 : vector<16x128xf32>
    %137 = math.exp %136 : vector<16x128xf32>
    %cst_53 = arith.constant 1.000000e+00 : f32
    %138 = vector.broadcast %cst_53 : f32 to vector<16x128xf32>
    %139 = arith.addf %138, %137 : vector<16x128xf32>
    %140 = arith.divf %138, %139 : vector<16x128xf32>
    %141 = arith.mulf %133, %140 : vector<16x128xf32>
    %c0_54 = arith.constant 0 : index
    %c0_55 = arith.constant 0 : index
    %c0_56 = arith.constant 0 : index
    %142 = vector.load %arg13[%c0_54, %c0_55, %c0_56] : memref<1x128x32xf32, #tpu.memory_space<vmem>>, vector<1x128x32xf32>
    %143 = vector.shape_cast %142 : vector<1x128x32xf32> to vector<128x32xf32>
    %cst_57 = arith.constant dense<0.000000e+00> : vector<16x32xf32>
    %144 = tpu.matmul %141, %143, %cst_57 {dimension_numbers = #tpu.dot_dimension_numbers<[1], [0], [0], [1], [0, 0, 1, 1], [], []>} : vector<16x128xf32>, vector<128x32xf32>, vector<16x32xf32> -> vector<16x32xf32>
    %145 = arith.addf %104, %144 : vector<16x32xf32>
    %146 = vector.broadcast %17 : vector<1x32xf32> to vector<16x32xf32>
    %147 = arith.addf %145, %146 : vector<16x32xf32>
    %148 = vector.shape_cast %147 : vector<16x32xf32> to vector<2x8x32xf32>
    %c0_58 = arith.constant 0 : index
    %c0_59 = arith.constant 0 : index
    %c0_60 = arith.constant 0 : index
    %149 = vector.load %arg16[%c0_58, %c0_59, %c0_60] : memref<2x8x32xf32, #tpu.memory_space<vmem>>, vector<2x8x32xf32>
    tpu.vector_store %arg16[%c0_58, %c0_59, %c0_60], %148 {strides = array<i32>} : memref<2x8x32xf32, #tpu.memory_space<vmem>>, vector<2x8x32xf32>,
    %c1_i32 = arith.constant 1 : i32
    %150 = arith.cmpi eq, %arg1, %c1_i32 : i32
    %151 = arith.extui %150 : i1 to i32
    %c0_i32_61 = arith.constant 0 : i32
    %152 = arith.cmpi ne, %151, %c0_i32_61 : i32
    scf.if %152 {
      %c0_62 = arith.constant 0 : index
      %c0_63 = arith.constant 0 : index
      %c0_64 = arith.constant 0 : index
      %153 = vector.load %arg15[%c0_62, %c0_63, %c0_64] : memref<2x8x32xf32, #tpu.memory_space<vmem>>, vector<2x8x32xf32>
      tpu.vector_store %arg15[%c0_62, %c0_63, %c0_64], %148 {strides = array<i32>} : memref<2x8x32xf32, #tpu.memory_space<vmem>>, vector<2x8x32xf32>,
    } else {
    }
    return
  }
  func.func @transform_0(%arg0: i32, %arg1: i32) -> (i32, i32, i32) {
    %c0_i32 = arith.constant 0 : i32
    %c0_i32_0 = arith.constant 0 : i32
    %c0_i32_1 = arith.constant 0 : i32
    return %arg0, %c0_i32, %c0_i32_0 : i32, i32, i32
  }
  func.func @transform_1(%arg0: i32, %arg1: i32) -> (i32, i32, i32) {
    %c0_i32 = arith.constant 0 : i32
    %c0_i32_0 = arith.constant 0 : i32
    %c0_i32_1 = arith.constant 0 : i32
    return %arg1, %c0_i32, %c0_i32_0 : i32, i32, i32
  }
  func.func @transform_2(%arg0: i32, %arg1: i32) -> (i32, i32, i32) {
    %c0_i32 = arith.constant 0 : i32
    %c0_i32_0 = arith.constant 0 : i32
    %c0_i32_1 = arith.constant 0 : i32
    return %arg1, %c0_i32, %c0_i32_0 : i32, i32, i32
  }
  func.func @transform_3(%arg0: i32, %arg1: i32) -> (i32, i32, i32) {
    %c0_i32 = arith.constant 0 : i32
    %c0_i32_0 = arith.constant 0 : i32
    %c0_i32_1 = arith.constant 0 : i32
    return %arg1, %c0_i32, %c0_i32_0 : i32, i32, i32
  }
  func.func @transform_4(%arg0: i32, %arg1: i32) -> (i32, i32, i32) {
    %c0_i32 = arith.constant 0 : i32
    %c0_i32_0 = arith.constant 0 : i32
    %c0_i32_1 = arith.constant 0 : i32
    return %arg1, %c0_i32, %c0_i32_0 : i32, i32, i32
  }
  func.func @transform_5(%arg0: i32, %arg1: i32) -> (i32, i32, i32) {
    %c0_i32 = arith.constant 0 : i32
    %c0_i32_0 = arith.constant 0 : i32
    %c0_i32_1 = arith.constant 0 : i32
    return %arg1, %c0_i32, %c0_i32_0 : i32, i32, i32
  }
  func.func @transform_6(%arg0: i32, %arg1: i32) -> (i32, i32, i32) {
    %c0_i32 = arith.constant 0 : i32
    %c0_i32_0 = arith.constant 0 : i32
    %c0_i32_1 = arith.constant 0 : i32
    return %arg1, %c0_i32, %c0_i32_0 : i32, i32, i32
  }
  func.func @transform_7(%arg0: i32, %arg1: i32) -> (i32, i32, i32) {
    %c0_i32 = arith.constant 0 : i32
    %c0_i32_0 = arith.constant 0 : i32
    %c0_i32_1 = arith.constant 0 : i32
    return %arg1, %c0_i32, %c0_i32_0 : i32, i32, i32
  }
  func.func @transform_8(%arg0: i32, %arg1: i32) -> (i32, i32, i32) {
    %c0_i32 = arith.constant 0 : i32
    %c0_i32_0 = arith.constant 0 : i32
    %c0_i32_1 = arith.constant 0 : i32
    return %arg1, %c0_i32, %c0_i32_0 : i32, i32, i32
  }
  func.func @transform_9(%arg0: i32, %arg1: i32) -> (i32, i32, i32) {
    %c0_i32 = arith.constant 0 : i32
    %c0_i32_0 = arith.constant 0 : i32
    %c0_i32_1 = arith.constant 0 : i32
    return %arg1, %c0_i32, %c0_i32_0 : i32, i32, i32
  }
  func.func @transform_10(%arg0: i32, %arg1: i32) -> (i32, i32, i32) {
    %c0_i32 = arith.constant 0 : i32
    %c0_i32_0 = arith.constant 0 : i32
    %c0_i32_1 = arith.constant 0 : i32
    return %arg1, %c0_i32, %c0_i32_0 : i32, i32, i32
  }
  func.func @transform_11(%arg0: i32, %arg1: i32) -> (i32, i32, i32) {
    %c0_i32 = arith.constant 0 : i32
    %c0_i32_0 = arith.constant 0 : i32
    %c0_i32_1 = arith.constant 0 : i32
    return %arg1, %c0_i32, %c0_i32_0 : i32, i32, i32
  }
  func.func @transform_12(%arg0: i32, %arg1: i32) -> (i32, i32, i32) {
    %c0_i32 = arith.constant 0 : i32
    %c0_i32_0 = arith.constant 0 : i32
    %c0_i32_1 = arith.constant 0 : i32
    return %arg1, %c0_i32, %c0_i32_0 : i32, i32, i32
  }
  func.func @transform_13(%arg0: i32, %arg1: i32) -> (i32, i32, i32) {
    %c0_i32 = arith.constant 0 : i32
    %c0_i32_0 = arith.constant 0 : i32
    %c0_i32_1 = arith.constant 0 : i32
    return %arg0, %c0_i32, %c0_i32_0 : i32, i32, i32
  }
}

</mosaic_0001>

<llo_original>
// kernel: tpu_custom_call.1
$region0: #{tpu_custom_call.1}
  #allocation0 [shape = 'u32[]', space=smem, size = 0x4, offset = 0x4, fixed_abs, tag = 'smem constant byte address 0x4 - core index']
  #allocation1 [shape = 'u32[144,128]{1,0:T(1,128)}', space=vmem, size = 0x12000, scoped, tag = 'internal scratch']
  #allocation2 [shape = 'f32[2,8,32]{2,1,0:T(8,128)}', space=vmem, size = 0x2000, scoped, tag = 'scratch operand']
  %s0 = inlined_call_operand.vmem [shape: f32[2,8,32], index: 0, kind: input, shape index: {}]
  %s1 = inlined_call_operand.vmem [shape: f32[2,1,32], index: 1, kind: input, shape index: {}]
  %s2 = inlined_call_operand.vmem [shape: f32[2,1,32], index: 2, kind: input, shape index: {}]
  %s3 = inlined_call_operand.vmem [shape: f32[2,32,96], index: 3, kind: input, shape index: {}]
  %s4 = inlined_call_operand.vmem [shape: f32[2,1,96], index: 4, kind: input, shape index: {}]
  %s5 = inlined_call_operand.vmem [shape: f32[2,32,32], index: 5, kind: input, shape index: {}]
  %s6 = inlined_call_operand.vmem [shape: f32[2,1,32], index: 6, kind: input, shape index: {}]
  %s7 = inlined_call_operand.vmem [shape: f32[2,1,32], index: 7, kind: input, shape index: {}]
  %s8 = inlined_call_operand.vmem [shape: f32[2,1,32], index: 8, kind: input, shape index: {}]
  %s9 = inlined_call_operand.vmem [shape: f32[2,32,128], index: 9, kind: input, shape index: {}]
  %s10 = inlined_call_operand.vmem [shape: f32[2,1,128], index: 10, kind: input, shape index: {}]
  %s11 = inlined_call_operand.vmem [shape: f32[2,128,32], index: 11, kind: input, shape index: {}]
  %s12 = inlined_call_operand.vmem [shape: f32[2,1,32], index: 12, kind: input, shape index: {}]
  %s13 = inlined_call_operand.hbm [shape: f32[2,8,32], index: 13, kind: output, shape index: {}]
  %s14 = sld [smem:[#allocation0]]
  $region93: #{tpu_custom_call.1} parent=0
    _
  %s16 = ssub.s32 1, %s14
  %s17 = scalar_select 0, %s16, %s14
  $region1: #{tpu_custom_call.1} parent=0
    #allocation3 [shape = 'u8[8192]{0}', space=vmem, size = 0x2000, scoped, tag = 'output window, operand 0, single buffered']
    #allocation4 [shape = 's32[2]{0}', space=sflag, size = 0x8, scoped, tag = 'scoped memory for tpu_custom_call.1']
    %18 = vsyncpa [#allocation4], 0
    loop: start=0, step=1, limit=4
    $region2: #{tpu_custom_call.1} parent=1 // loop_pre_header
      _
    $region3: #{tpu_custom_call.1} parent=1 // loop_header
      %s20 = sphi 0, %s24
      %p21 = scmp.ge.s32.totalorder %s20, 4
      %s27 = sphi 0, %s39
      %s28 = sphi 0, %s35
      %s29 = sphi 0, %s27
      %s30 = sphi 0, %s28
      %s31 = sphi 0, %s29
      %s32 = sphi 0, %s30
      %s42 = sphi 0, %s44
      %s45 = sphi 0, %s42
      %s46 = sphi 0, %s45
      %s62 = sphi 0, %s46
      %s68 = sphi 0, %s70
      %s71 = sphi 0, %s68
      %s72 = sphi 0, %s71
      %s88 = sphi 0, %s72
      %s94 = sphi 0, %s96
      %s97 = sphi 0, %s94
      %s98 = sphi 0, %s97
      %s114 = sphi 0, %s98
      %s120 = sphi 0, %s122
      %s123 = sphi 0, %s120
      %s124 = sphi 0, %s123
      %s140 = sphi 0, %s124
      %s146 = sphi 0, %s148
      %s149 = sphi 0, %s146
      %s150 = sphi 0, %s149
      %s166 = sphi 0, %s150
      %s172 = sphi 0, %s174
      %s175 = sphi 0, %s172
      %s176 = sphi 0, %s175
      %s192 = sphi 0, %s176
      %s198 = sphi 0, %s200
      %s201 = sphi 0, %s198
      %s202 = sphi 0, %s201
      %s218 = sphi 0, %s202
      %s224 = sphi 0, %s226
      %s227 = sphi 0, %s224
      %s228 = sphi 0, %s227
      %s244 = sphi 0, %s228
      %s250 = sphi 0, %s252
      %s253 = sphi 0, %s250
      %s254 = sphi 0, %s253
      %s270 = sphi 0, %s254
      %s276 = sphi 0, %s278
      %s279 = sphi 0, %s276
      %s280 = sphi 0, %s279
      %s296 = sphi 0, %s280
      %s302 = sphi 0, %s304
      %s305 = sphi 0, %s302
      %s306 = sphi 0, %s305
      %s322 = sphi 0, %s306
      %s328 = sphi 0, %s330
      %s331 = sphi 0, %s328
      %s332 = sphi 0, %s331
      %s348 = sphi 0, %s332
      %s354 = sphi 0, %s356
      %s357 = sphi 0, %s354
      %s358 = sphi 0, %s357
      %s374 = sphi 0, %s358
      %s380 = sphi 0, %s382
      %s383 = sphi 0, %s380
      %s384 = sphi 0, %s383
      %s400 = sphi 0, %s384
    $region4: #{tpu_custom_call.1} parent=1 // loop_header_branch
      %23 = sbr.rel (%p21) target = $region8
    $region5: #{tpu_custom_call.1} parent=1 // loop_body
      %s25 = ssub.s32 %s20, 1
      %s26 = ssub.s32 %s20, 2
      %s33 = sadd.s32 1, %s28
      %p34 = scmp.ge.s32.totalorder %s33, 2
      %s35 = scalar_select %p34, 0, %s33
      %s36 = sadd.s32 1, %s27
      %s37 = scalar_select %p34, %s36, %s27
      %p38 = scmp.ge.s32.totalorder %s37, 1
      %s39 = scalar_select %p38, 0, %s37
      %s40 = ssub.s32 %s27, %s39
      %p41 = scmp.eq.s32.totalorder %s40, 0
      %s43 = sadd.s32 %s42, 1
      %s44 = scalar_select %p41, %s42, %s43
      %p47 = pneg %p41
      %p48 = scmp.eq.s32.totalorder %s20, 1
      %p49 = por %p47, %p48
      %p50 = scmp.ne.s32.totalorder %s42, %s45
      %p51 = scmp.eq.s32.totalorder %s20, 0
      %p52 = por %p50, %p51
      %p53 = scmp.ne.s32.totalorder %s42, %s45
      %p54 = scmp.eq.s32.totalorder %s25, 1
      %p55 = por %p53, %p54
      %p56 = scmp.ne.s32.totalorder %s45, %s46
      %p57 = scmp.eq.s32.totalorder %s25, 0
      %p58 = por %p56, %p57
      %p59 = scmp.ne.s32.totalorder %s45, %s46
      %p60 = scmp.eq.s32.totalorder %s26, 1
      %p61 = por %p59, %p60
      %p63 = scmp.ne.s32.totalorder %s46, %s62
      %p64 = scmp.eq.s32.totalorder %s26, 0
      %p65 = por %p63, %p64
      %s66 = ssub.s32 %s28, %s35
      %p67 = scmp.eq.s32.totalorder %s66, 0
      %s69 = sadd.s32 %s68, 1
      %s70 = scalar_select %p67, %s68, %s69
      %p73 = pneg %p67
      %p74 = scmp.eq.s32.totalorder %s20, 1
      %p75 = por %p73, %p74
      %p76 = scmp.ne.s32.totalorder %s68, %s71
      %p77 = scmp.eq.s32.totalorder %s20, 0
      %p78 = por %p76, %p77
      %p79 = scmp.ne.s32.totalorder %s68, %s71
      %p80 = scmp.eq.s32.totalorder %s25, 1
      %p81 = por %p79, %p80
      %p82 = scmp.ne.s32.totalorder %s71, %s72
      %p83 = scmp.eq.s32.totalorder %s25, 0
      %p84 = por %p82, %p83
      %p85 = scmp.ne.s32.totalorder %s71, %s72
      %p86 = scmp.eq.s32.totalorder %s26, 1
      %p87 = por %p85, %p86
      %p89 = scmp.ne.s32.totalorder %s72, %s88
      %p90 = scmp.eq.s32.totalorder %s26, 0
      %p91 = por %p89, %p90
      %s92 = ssub.s32 %s28, %s35
      %p93 = scmp.eq.s32.totalorder %s92, 0
      %s95 = sadd.s32 %s94, 1
      %s96 = scalar_select %p93, %s94, %s95
      %p99 = pneg %p93
      %p100 = scmp.eq.s32.totalorder %s20, 1
      %p101 = por %p99, %p100
      %p102 = scmp.ne.s32.totalorder %s94, %s97
      %p103 = scmp.eq.s32.totalorder %s20, 0
      %p104 = por %p102, %p103
      %p105 = scmp.ne.s32.totalorder %s94, %s97
      %p106 = scmp.eq.s32.totalorder %s25, 1
      %p107 = por %p105, %p106
      %p108 = scmp.ne.s32.totalorder %s97, %s98
      %p109 = scmp.eq.s32.totalorder %s25, 0
      %p110 = por %p108, %p109
      %p111 = scmp.ne.s32.totalorder %s97, %s98
      %p112 = scmp.eq.s32.totalorder %s26, 1
      %p113 = por %p111, %p112
      %p115 = scmp.ne.s32.totalorder %s98, %s114
      %p116 = scmp.eq.s32.totalorder %s26, 0
      %p117 = por %p115, %p116
      %s118 = ssub.s32 %s28, %s35
      %p119 = scmp.eq.s32.totalorder %s118, 0
      %s121 = sadd.s32 %s120, 1
      %s122 = scalar_select %p119, %s120, %s121
      %p125 = pneg %p119
      %p126 = scmp.eq.s32.totalorder %s20, 1
      %p127 = por %p125, %p126
      %p128 = scmp.ne.s32.totalorder %s120, %s123
      %p129 = scmp.eq.s32.totalorder %s20, 0
      %p130 = por %p128, %p129
      %p131 = scmp.ne.s32.totalorder %s120, %s123
      %p132 = scmp.eq.s32.totalorder %s25, 1
      %p133 = por %p131, %p132
      %p134 = scmp.ne.s32.totalorder %s123, %s124
      %p135 = scmp.eq.s32.totalorder %s25, 0
      %p136 = por %p134, %p135
      %p137 = scmp.ne.s32.totalorder %s123, %s124
      %p138 = scmp.eq.s32.totalorder %s26, 1
      %p139 = por %p137, %p138
      %p141 = scmp.ne.s32.totalorder %s124, %s140
      %p142 = scmp.eq.s32.totalorder %s26, 0
      %p143 = por %p141, %p142
      %s144 = ssub.s32 %s28, %s35
      %p145 = scmp.eq.s32.totalorder %s144, 0
      %s147 = sadd.s32 %s146, 1
      %s148 = scalar_select %p145, %s146, %s147
      %p151 = pneg %p145
      %p152 = scmp.eq.s32.totalorder %s20, 1
      %p153 = por %p151, %p152
      %p154 = scmp.ne.s32.totalorder %s146, %s149
      %p155 = scmp.eq.s32.totalorder %s20, 0
      %p156 = por %p154, %p155
      %p157 = scmp.ne.s32.totalorder %s146, %s149
      %p158 = scmp.eq.s32.totalorder %s25, 1
      %p159 = por %p157, %p158
      %p160 = scmp.ne.s32.totalorder %s149, %s150
      %p161 = scmp.eq.s32.totalorder %s25, 0
      %p162 = por %p160, %p161
      %p163 = scmp.ne.s32.totalorder %s149, %s150
      %p164 = scmp.eq.s32.totalorder %s26, 1
      %p165 = por %p163, %p164
      %p167 = scmp.ne.s32.totalorder %s150, %s166
      %p168 = scmp.eq.s32.totalorder %s26, 0
      %p169 = por %p167, %p168
      %s170 = ssub.s32 %s28, %s35
      %p171 = scmp.eq.s32.totalorder %s170, 0
      %s173 = sadd.s32 %s172, 1
      %s174 = scalar_select %p171, %s172, %s173
      %p177 = pneg %p171
      %p178 = scmp.eq.s32.totalorder %s20, 1
      %p179 = por %p177, %p178
      %p180 = scmp.ne.s32.totalorder %s172, %s175
      %p181 = scmp.eq.s32.totalorder %s20, 0
      %p182 = por %p180, %p181
      %p183 = scmp.ne.s32.totalorder %s172, %s175
      %p184 = scmp.eq.s32.totalorder %s25, 1
      %p185 = por %p183, %p184
      %p186 = scmp.ne.s32.totalorder %s175, %s176
      %p187 = scmp.eq.s32.totalorder %s25, 0
      %p188 = por %p186, %p187
      %p189 = scmp.ne.s32.totalorder %s175, %s176
      %p190 = scmp.eq.s32.totalorder %s26, 1
      %p191 = por %p189, %p190
      %p193 = scmp.ne.s32.totalorder %s176, %s192
      %p194 = scmp.eq.s32.totalorder %s26, 0
      %p195 = por %p193, %p194
      %s196 = ssub.s32 %s28, %s35
      %p197 = scmp.eq.s32.totalorder %s196, 0
      %s199 = sadd.s32 %s198, 1
      %s200 = scalar_select %p197, %s198, %s199
      %p203 = pneg %p197
      %p204 = scmp.eq.s32.totalorder %s20, 1
      %p205 = por %p203, %p204
      %p206 = scmp.ne.s32.totalorder %s198, %s201
      %p207 = scmp.eq.s32.totalorder %s20, 0
      %p208 = por %p206, %p207
      %p209 = scmp.ne.s32.totalorder %s198, %s201
      %p210 = scmp.eq.s32.totalorder %s25, 1
      %p211 = por %p209, %p210
      %p212 = scmp.ne.s32.totalorder %s201, %s202
      %p213 = scmp.eq.s32.totalorder %s25, 0
      %p214 = por %p212, %p213
      %p215 = scmp.ne.s32.totalorder %s201, %s202
      %p216 = scmp.eq.s32.totalorder %s26, 1
      %p217 = por %p215, %p216
      %p219 = scmp.ne.s32.totalorder %s202, %s218
      %p220 = scmp.eq.s32.totalorder %s26, 0
      %p221 = por %p219, %p220
      %s222 = ssub.s32 %s28, %s35
      %p223 = scmp.eq.s32.totalorder %s222, 0
      %s225 = sadd.s32 %s224, 1
      %s226 = scalar_select %p223, %s224, %s225
      %p229 = pneg %p223
      %p230 = scmp.eq.s32.totalorder %s20, 1
      %p231 = por %p229, %p230
      %p232 = scmp.ne.s32.totalorder %s224, %s227
      %p233 = scmp.eq.s32.totalorder %s20, 0
      %p234 = por %p232, %p233
      %p235 = scmp.ne.s32.totalorder %s224, %s227
      %p236 = scmp.eq.s32.totalorder %s25, 1
      %p237 = por %p235, %p236
      %p238 = scmp.ne.s32.totalorder %s227, %s228
      %p239 = scmp.eq.s32.totalorder %s25, 0
      %p240 = por %p238, %p239
      %p241 = scmp.ne.s32.totalorder %s227, %s228
      %p242 = scmp.eq.s32.totalorder %s26, 1
      %p243 = por %p241, %p242
      %p245 = scmp.ne.s32.totalorder %s228, %s244
      %p246 = scmp.eq.s32.totalorder %s26, 0
      %p247 = por %p245, %p246
      %s248 = ssub.s32 %s28, %s35
      %p249 = scmp.eq.s32.totalorder %s248, 0
      %s251 = sadd.s32 %s250, 1
      %s252 = scalar_select %p249, %s250, %s251
      %p255 = pneg %p249
      %p256 = scmp.eq.s32.totalorder %s20, 1
      %p257 = por %p255, %p256
      %p258 = scmp.ne.s32.totalorder %s250, %s253
      %p259 = scmp.eq.s32.totalorder %s20, 0
      %p260 = por %p258, %p259
      %p261 = scmp.ne.s32.totalorder %s250, %s253
      %p262 = scmp.eq.s32.totalorder %s25, 1
      %p263 = por %p261, %p262
      %p264 = scmp.ne.s32.totalorder %s253, %s254
      %p265 = scmp.eq.s32.totalorder %s25, 0
      %p266 = por %p264, %p265
      %p267 = scmp.ne.s32.totalorder %s253, %s254
      %p268 = scmp.eq.s32.totalorder %s26, 1
      %p269 = por %p267, %p268
      %p271 = scmp.ne.s32.totalorder %s254, %s270
      %p272 = scmp.eq.s32.totalorder %s26, 0
      %p273 = por %p271, %p272
      %s274 = ssub.s32 %s28, %s35
      %p275 = scmp.eq.s32.totalorder %s274, 0
      %s277 = sadd.s32 %s276, 1
      %s278 = scalar_select %p275, %s276, %s277
      %p281 = pneg %p275
      %p282 = scmp.eq.s32.totalorder %s20, 1
      %p283 = por %p281, %p282
      %p284 = scmp.ne.s32.totalorder %s276, %s279
      %p285 = scmp.eq.s32.totalorder %s20, 0
      %p286 = por %p284, %p285
      %p287 = scmp.ne.s32.totalorder %s276, %s279
      %p288 = scmp.eq.s32.totalorder %s25, 1
      %p289 = por %p287, %p288
      %p290 = scmp.ne.s32.totalorder %s279, %s280
      %p291 = scmp.eq.s32.totalorder %s25, 0
      %p292 = por %p290, %p291
      %p293 = scmp.ne.s32.totalorder %s279, %s280
      %p294 = scmp.eq.s32.totalorder %s26, 1
      %p295 = por %p293, %p294
      %p297 = scmp.ne.s32.totalorder %s280, %s296
      %p298 = scmp.eq.s32.totalorder %s26, 0
      %p299 = por %p297, %p298
      %s300 = ssub.s32 %s28, %s35
      %p301 = scmp.eq.s32.totalorder %s300, 0
      %s303 = sadd.s32 %s302, 1
      %s304 = scalar_select %p301, %s302, %s303
      %p307 = pneg %p301
      %p308 = scmp.eq.s32.totalorder %s20, 1
      %p309 = por %p307, %p308
      %p310 = scmp.ne.s32.totalorder %s302, %s305
      %p311 = scmp.eq.s32.totalorder %s20, 0
      %p312 = por %p310, %p311
      %p313 = scmp.ne.s32.totalorder %s302, %s305
      %p314 = scmp.eq.s32.totalorder %s25, 1
      %p315 = por %p313, %p314
      %p316 = scmp.ne.s32.totalorder %s305, %s306
      %p317 = scmp.eq.s32.totalorder %s25, 0
      %p318 = por %p316, %p317
      %p319 = scmp.ne.s32.totalorder %s305, %s306
      %p320 = scmp.eq.s32.totalorder %s26, 1
      %p321 = por %p319, %p320
      %p323 = scmp.ne.s32.totalorder %s306, %s322
      %p324 = scmp.eq.s32.totalorder %s26, 0
      %p325 = por %p323, %p324
      %s326 = ssub.s32 %s28, %s35
      %p327 = scmp.eq.s32.totalorder %s326, 0
      %s329 = sadd.s32 %s328, 1
      %s330 = scalar_select %p327, %s328, %s329
      %p333 = pneg %p327
      %p334 = scmp.eq.s32.totalorder %s20, 1
      %p335 = por %p333, %p334
      %p336 = scmp.ne.s32.totalorder %s328, %s331
      %p337 = scmp.eq.s32.totalorder %s20, 0
      %p338 = por %p336, %p337
      %p339 = scmp.ne.s32.totalorder %s328, %s331
      %p340 = scmp.eq.s32.totalorder %s25, 1
      %p341 = por %p339, %p340
      %p342 = scmp.ne.s32.totalorder %s331, %s332
      %p343 = scmp.eq.s32.totalorder %s25, 0
      %p344 = por %p342, %p343
      %p345 = scmp.ne.s32.totalorder %s331, %s332
      %p346 = scmp.eq.s32.totalorder %s26, 1
      %p347 = por %p345, %p346
      %p349 = scmp.ne.s32.totalorder %s332, %s348
      %p350 = scmp.eq.s32.totalorder %s26, 0
      %p351 = por %p349, %p350
      %s352 = ssub.s32 %s28, %s35
      %p353 = scmp.eq.s32.totalorder %s352, 0
      %s355 = sadd.s32 %s354, 1
      %s356 = scalar_select %p353, %s354, %s355
      %p359 = pneg %p353
      %p360 = scmp.eq.s32.totalorder %s20, 1
      %p361 = por %p359, %p360
      %p362 = scmp.ne.s32.totalorder %s354, %s357
      %p363 = scmp.eq.s32.totalorder %s20, 0
      %p364 = por %p362, %p363
      %p365 = scmp.ne.s32.totalorder %s354, %s357
      %p366 = scmp.eq.s32.totalorder %s25, 1
      %p367 = por %p365, %p366
      %p368 = scmp.ne.s32.totalorder %s357, %s358
      %p369 = scmp.eq.s32.totalorder %s25, 0
      %p370 = por %p368, %p369
      %p371 = scmp.ne.s32.totalorder %s357, %s358
      %p372 = scmp.eq.s32.totalorder %s26, 1
      %p373 = por %p371, %p372
      %p375 = scmp.ne.s32.totalorder %s358, %s374
      %p376 = scmp.eq.s32.totalorder %s26, 0
      %p377 = por %p375, %p376
      %s378 = ssub.s32 %s27, %s39
      %p379 = scmp.eq.s32.totalorder %s378, 0
      %s381 = sadd.s32 %s380, 1
      %s382 = scalar_select %p379, %s380, %s381
      %p385 = pneg %p379
      %p386 = scmp.eq.s32.totalorder %s20, 1
      %p387 = por %p385, %p386
      %p388 = scmp.ne.s32.totalorder %s380, %s383
      %p389 = scmp.eq.s32.totalorder %s20, 0
      %p390 = por %p388, %p389
      %p391 = scmp.ne.s32.totalorder %s380, %s383
      %p392 = scmp.eq.s32.totalorder %s25, 1
      %p393 = por %p391, %p392
      %p394 = scmp.ne.s32.totalorder %s383, %s384
      %p395 = scmp.eq.s32.totalorder %s25, 0
      %p396 = por %p394, %p395
      %p397 = scmp.ne.s32.totalorder %s383, %s384
      %p398 = scmp.eq.s32.totalorder %s26, 1
      %p399 = por %p397, %p398
      %p401 = scmp.ne.s32.totalorder %s384, %s400
      %p402 = scmp.eq.s32.totalorder %s26, 0
      %p403 = por %p401, %p402
      %p404 = scmp.le.s32.totalorder 1, %s20
      %p405 = scmp.lt.s32.totalorder %s20, 3
      %p406 = pnand %p404, %p405
      %p407 = pneg %p406
      // Predicated region
      $region9: #{tpu_custom_call.1} parent=5 // pred_check
        _
      $region10: #{tpu_custom_call.1} parent=5 // pred_check_branch
        %409 = sbr.rel (%p406) target = $region12
      $region11: #{tpu_custom_call.1} parent=5 // pred_region
        %s410 = ssub.s32 %s20, 1
        // Predicated region
        $region13: #{tpu_custom_call.1} parent=11 // pred_check
          %p411 = pneg %p58
        $region14: #{tpu_custom_call.1} parent=11 // pred_check_branch
          %413 = sbr.rel (%p411) target = $region16
        $region15: #{tpu_custom_call.1} parent=11 // pred_region
          %s414 = smul.u32 2, %s29
          %p415 = scmp.lt.s32.totalorder %s414, 1
          %s416 = scalar_select %p415, %s414, 1
          %s417 = smul.addr %s416, 8
          %s418 = scalar_lea.vmem %s0, %s417
          %s419 = smul.u32 2, %s29
        $region16: #{tpu_custom_call.1} parent=11 // pred_fallthru
          _
      $region12: #{tpu_custom_call.1} parent=5 // pred_fallthru
        _
      %p420 = scmp.lt.s32.totalorder %s20, 2
      // Predicated region
      $region17: #{tpu_custom_call.1} parent=5 // pred_check
        %p421 = pneg %p420
      $region18: #{tpu_custom_call.1} parent=5 // pred_check_branch
        %423 = sbr.rel (%p421) target = $region20
      $region19: #{tpu_custom_call.1} parent=5 // pred_region
        // Predicated region
        $region21: #{tpu_custom_call.1} parent=19 // pred_check
          %p424 = pneg %p78
        $region22: #{tpu_custom_call.1} parent=19 // pred_check_branch
          %426 = sbr.rel (%p424) target = $region24
        $region23: #{tpu_custom_call.1} parent=19 // pred_region
          %p427 = scmp.lt.s32.totalorder %s28, 1
          %s428 = scalar_select %p427, %s28, 1
          %s429 = scalar_lea.vmem %s1, %s428
        $region24: #{tpu_custom_call.1} parent=19 // pred_fallthru
          _
        // Predicated region
        $region25: #{tpu_custom_call.1} parent=19 // pred_check
          %p430 = pneg %p104
        $region26: #{tpu_custom_call.1} parent=19 // pred_check_branch
          %432 = sbr.rel (%p430) target = $region28
        $region27: #{tpu_custom_call.1} parent=19 // pred_region
          %p433 = scmp.lt.s32.totalorder %s28, 1
          %s434 = scalar_select %p433, %s28, 1
          %s435 = scalar_lea.vmem %s2, %s434
        $region28: #{tpu_custom_call.1} parent=19 // pred_fallthru
          _
        // Predicated region
        $region29: #{tpu_custom_call.1} parent=19 // pred_check
          %p436 = pneg %p130
        $region30: #{tpu_custom_call.1} parent=19 // pred_check_branch
          %438 = sbr.rel (%p436) target = $region32
        $region31: #{tpu_custom_call.1} parent=19 // pred_region
          %p439 = scmp.lt.s32.totalorder %s28, 1
          %s440 = scalar_select %p439, %s28, 1
          %s441 = smul.addr %s440, 4
          %s442 = smul.addr %s441, 8
          %s443 = scalar_lea.vmem %s3, %s442
        $region32: #{tpu_custom_call.1} parent=19 // pred_fallthru
          _
        // Predicated region
        $region33: #{tpu_custom_call.1} parent=19 // pred_check
          %p444 = pneg %p156
        $region34: #{tpu_custom_call.1} parent=19 // pred_check_branch
          %446 = sbr.rel (%p444) target = $region36
        $region35: #{tpu_custom_call.1} parent=19 // pred_region
          %p447 = scmp.lt.s32.totalorder %s28, 1
          %s448 = scalar_select %p447, %s28, 1
          %s449 = scalar_lea.vmem %s4, %s448
        $region36: #{tpu_custom_call.1} parent=19 // pred_fallthru
          _
        // Predicated region
        $region37: #{tpu_custom_call.1} parent=19 // pred_check
          %p450 = pneg %p182
        $region38: #{tpu_custom_call.1} parent=19 // pred_check_branch
          %452 = sbr.rel (%p450) target = $region40
        $region39: #{tpu_custom_call.1} parent=19 // pred_region
          %p453 = scmp.lt.s32.totalorder %s28, 1
          %s454 = scalar_select %p453, %s28, 1
          %s455 = smul.addr %s454, 4
          %s456 = smul.addr %s455, 8
          %s457 = scalar_lea.vmem %s5, %s456
        $region40: #{tpu_custom_call.1} parent=19 // pred_fallthru
          _
        // Predicated region
        $region41: #{tpu_custom_call.1} parent=19 // pred_check
          %p458 = pneg %p208
        $region42: #{tpu_custom_call.1} parent=19 // pred_check_branch
          %460 = sbr.rel (%p458) target = $region44
        $region43: #{tpu_custom_call.1} parent=19 // pred_region
          %p461 = scmp.lt.s32.totalorder %s28, 1
          %s462 = scalar_select %p461, %s28, 1
          %s463 = scalar_lea.vmem %s6, %s462
        $region44: #{tpu_custom_call.1} parent=19 // pred_fallthru
          _
        // Predicated region
        $region45: #{tpu_custom_call.1} parent=19 // pred_check
          %p464 = pneg %p234
        $region46: #{tpu_custom_call.1} parent=19 // pred_check_branch
          %466 = sbr.rel (%p464) target = $region48
        $region47: #{tpu_custom_call.1} parent=19 // pred_region
          %p467 = scmp.lt.s32.totalorder %s28, 1
          %s468 = scalar_select %p467, %s28, 1
          %s469 = scalar_lea.vmem %s7, %s468
        $region48: #{tpu_custom_call.1} parent=19 // pred_fallthru
          _
        // Predicated region
        $region49: #{tpu_custom_call.1} parent=19 // pred_check
          %p470 = pneg %p260
        $region50: #{tpu_custom_call.1} parent=19 // pred_check_branch
          %472 = sbr.rel (%p470) target = $region52
        $region51: #{tpu_custom_call.1} parent=19 // pred_region
          %p473 = scmp.lt.s32.totalorder %s28, 1
          %s474 = scalar_select %p473, %s28, 1
          %s475 = scalar_lea.vmem %s8, %s474
        $region52: #{tpu_custom_call.1} parent=19 // pred_fallthru
          _
        // Predicated region
        $region53: #{tpu_custom_call.1} parent=19 // pred_check
          %p476 = pneg %p286
        $region54: #{tpu_custom_call.1} parent=19 // pred_check_branch
          %478 = sbr.rel (%p476) target = $region56
        $region55: #{tpu_custom_call.1} parent=19 // pred_region
          %p479 = scmp.lt.s32.totalorder %s28, 1
          %s480 = scalar_select %p479, %s28, 1
          %s481 = smul.addr %s480, 4
          %s482 = smul.addr %s481, 8
          %s483 = scalar_lea.vmem %s9, %s482
        $region56: #{tpu_custom_call.1} parent=19 // pred_fallthru
          _
        // Predicated region
        $region57: #{tpu_custom_call.1} parent=19 // pred_check
          %p484 = pneg %p312
        $region58: #{tpu_custom_call.1} parent=19 // pred_check_branch
          %486 = sbr.rel (%p484) target = $region60
        $region59: #{tpu_custom_call.1} parent=19 // pred_region
          %p487 = scmp.lt.s32.totalorder %s28, 1
          %s488 = scalar_select %p487, %s28, 1
          %s489 = scalar_lea.vmem %s10, %s488
        $region60: #{tpu_custom_call.1} parent=19 // pred_fallthru
          _
        // Predicated region
        $region61: #{tpu_custom_call.1} parent=19 // pred_check
          %p490 = pneg %p338
        $region62: #{tpu_custom_call.1} parent=19 // pred_check_branch
          %492 = sbr.rel (%p490) target = $region64
        $region63: #{tpu_custom_call.1} parent=19 // pred_region
          %p493 = scmp.lt.s32.totalorder %s28, 1
          %s494 = scalar_select %p493, %s28, 1
          %s495 = smul.addr %s494, 16
          %s496 = smul.addr %s495, 8
          %s497 = scalar_lea.vmem %s11, %s496
        $region64: #{tpu_custom_call.1} parent=19 // pred_fallthru
          _
        // Predicated region
        $region65: #{tpu_custom_call.1} parent=19 // pred_check
          %p498 = pneg %p364
        $region66: #{tpu_custom_call.1} parent=19 // pred_check_branch
          %500 = sbr.rel (%p498) target = $region68
        $region67: #{tpu_custom_call.1} parent=19 // pred_region
          %p501 = scmp.lt.s32.totalorder %s28, 1
          %s502 = scalar_select %p501, %s28, 1
          %s503 = scalar_lea.vmem %s12, %s502
        $region68: #{tpu_custom_call.1} parent=19 // pred_fallthru
          _
      $region20: #{tpu_custom_call.1} parent=5 // pred_fallthru
        _
      %p504 = scmp.le.s32.totalorder 1, %s20
      %p505 = scmp.lt.s32.totalorder %s20, 3
      %p506 = pnand %p504, %p505
      %p507 = pneg %p506
      // Predicated region
      $region69: #{tpu_custom_call.1} parent=5 // pred_check
        _
      $region70: #{tpu_custom_call.1} parent=5 // pred_check_branch
        %509 = sbr.rel (%p506) target = $region72
      $region71: #{tpu_custom_call.1} parent=5 // pred_region
        %s510 = ssub.s32 %s20, 1
        %s511 = smul.u32 2, %s29
        %p512 = scmp.lt.s32.totalorder %s511, 1
        %s513 = scalar_select %p512, %s511, 1
        %s514 = smul.addr %s513, 8
        %s515 = scalar_lea.vmem %s0, %s514
        %p516 = pneg %p58
        %p517 = pneg %p55
        %p518 = scmp.lt.s32.totalorder %s30, 1
        %s519 = scalar_select %p518, %s30, 1
        %s520 = scalar_lea.vmem %s1, %s519
        %p521 = pneg %p84
        %p522 = pneg %p81
        %p523 = scmp.lt.s32.totalorder %s30, 1
        %s524 = scalar_select %p523, %s30, 1
        %s525 = scalar_lea.vmem %s2, %s524
        %p526 = pneg %p110
        %p527 = pneg %p107
        %p528 = scmp.lt.s32.totalorder %s30, 1
        %s529 = scalar_select %p528, %s30, 1
        %s530 = smul.addr %s529, 4
        %s531 = smul.addr %s530, 8
        %s532 = scalar_lea.vmem %s3, %s531
        %p533 = pneg %p136
        %p534 = pneg %p133
        %p535 = scmp.lt.s32.totalorder %s30, 1
        %s536 = scalar_select %p535, %s30, 1
        %s537 = scalar_lea.vmem %s4, %s536
        %p538 = pneg %p162
        %p539 = pneg %p159
        %p540 = scmp.lt.s32.totalorder %s30, 1
        %s541 = scalar_select %p540, %s30, 1
        %s542 = smul.addr %s541, 4
        %s543 = smul.addr %s542, 8
        %s544 = scalar_lea.vmem %s5, %s543
        %p545 = pneg %p188
        %p546 = pneg %p185
        %p547 = scmp.lt.s32.totalorder %s30, 1
        %s548 = scalar_select %p547, %s30, 1
        %s549 = scalar_lea.vmem %s6, %s548
        %p550 = pneg %p214
        %p551 = pneg %p211
        %p552 = scmp.lt.s32.totalorder %s30, 1
        %s553 = scalar_select %p552, %s30, 1
        %s554 = scalar_lea.vmem %s7, %s553
        %p555 = pneg %p240
        %p556 = pneg %p237
        %p557 = scmp.lt.s32.totalorder %s30, 1
        %s558 = scalar_select %p557, %s30, 1
        %s559 = scalar_lea.vmem %s8, %s558
        %p560 = pneg %p266
        %p561 = pneg %p263
        %p562 = scmp.lt.s32.totalorder %s30, 1
        %s563 = scalar_select %p562, %s30, 1
        %s564 = smul.addr %s563, 4
        %s565 = smul.addr %s564, 8
        %s566 = scalar_lea.vmem %s9, %s565
        %p567 = pneg %p292
        %p568 = pneg %p289
        %p569 = scmp.lt.s32.totalorder %s30, 1
        %s570 = scalar_select %p569, %s30, 1
        %s571 = scalar_lea.vmem %s10, %s570
        %p572 = pneg %p318
        %p573 = pneg %p315
        %p574 = scmp.lt.s32.totalorder %s30, 1
        %s575 = scalar_select %p574, %s30, 1
        %s576 = smul.addr %s575, 16
        %s577 = smul.addr %s576, 8
        %s578 = scalar_lea.vmem %s11, %s577
        %p579 = pneg %p344
        %p580 = pneg %p341
        %p581 = scmp.lt.s32.totalorder %s30, 1
        %s582 = scalar_select %p581, %s30, 1
        %s583 = scalar_lea.vmem %s12, %s582
        %p584 = pneg %p370
        %p585 = pneg %p367
        %p586 = pneg %p396
        %p587 = pneg %p393
        %s588 = smul.u32 2, %s29
        %p589 = scmp.lt.s32.totalorder %s588, 1
        %s590 = scalar_select %p589, %s588, 1
        %s591 = smul.addr %s590, 8
        %s592 = scalar_lea.vmem %s0, %s591
        %s593 = smul.u32 2, %s29
        %p594 = scmp.lt.s32.totalorder %s30, 1
        %s595 = scalar_select %p594, %s30, 1
        %s596 = scalar_lea.vmem %s1, %s595
        %p597 = scmp.lt.s32.totalorder %s30, 1
        %s598 = scalar_select %p597, %s30, 1
        %s599 = scalar_lea.vmem %s2, %s598
        %p600 = scmp.lt.s32.totalorder %s30, 1
        %s601 = scalar_select %p600, %s30, 1
        %s602 = smul.addr %s601, 4
        %s603 = smul.addr %s602, 8
        %s604 = scalar_lea.vmem %s3, %s603
        %p605 = scmp.lt.s32.totalorder %s30, 1
        %s606 = scalar_select %p605, %s30, 1
        %s607 = scalar_lea.vmem %s4, %s606
        %p608 = scmp.lt.s32.totalorder %s30, 1
        %s609 = scalar_select %p608, %s30, 1
        %s610 = smul.addr %s609, 4
        %s611 = smul.addr %s610, 8
        %s612 = scalar_lea.vmem %s5, %s611
        %p613 = scmp.lt.s32.totalorder %s30, 1
        %s614 = scalar_select %p613, %s30, 1
        %s615 = scalar_lea.vmem %s6, %s614
        %p616 = scmp.lt.s32.totalorder %s30, 1
        %s617 = scalar_select %p616, %s30, 1
        %s618 = scalar_lea.vmem %s7, %s617
        %p619 = scmp.lt.s32.totalorder %s30, 1
        %s620 = scalar_select %p619, %s30, 1
        %s621 = scalar_lea.vmem %s8, %s620
        %p622 = scmp.lt.s32.totalorder %s30, 1
        %s623 = scalar_select %p622, %s30, 1
        %s624 = smul.addr %s623, 4
        %s625 = smul.addr %s624, 8
        %s626 = scalar_lea.vmem %s9, %s625
        %p627 = scmp.lt.s32.totalorder %s30, 1
        %s628 = scalar_select %p627, %s30, 1
        %s629 = scalar_lea.vmem %s10, %s628
        %p630 = scmp.lt.s32.totalorder %s30, 1
        %s631 = scalar_select %p630, %s30, 1
        %s632 = smul.addr %s631, 16
        %s633 = smul.addr %s632, 8
        %s634 = scalar_lea.vmem %s11, %s633
        %p635 = scmp.lt.s32.totalorder %s30, 1
        %s636 = scalar_select %p635, %s30, 1
        %s637 = scalar_lea.vmem %s12, %s636
        %s638 = smul.u32 2, %s29
        %p639 = scmp.eq.s32.totalorder %s30, 0
        // Predicated region
        $region73: #{tpu_custom_call.1} parent=71 // pred_check
          %p640 = pneg %p639
        $region74: #{tpu_custom_call.1} parent=71 // pred_check_branch
          %642 = sbr.rel (%p640) target = $region76
        $region75: #{tpu_custom_call.1} parent=71 // pred_region
          %v643 = vld [vmem:[%s592] sm:$0xff]
          %v644 = vld [vmem:[%s592 + $0x8] sm:$0xff]
          %vm645 = vcmask 261120
          %646 = vst.msk [vmem:[#allocation2] sm:$0xff] %vm645, %v643
          %647 = vst.msk [vmem:[#allocation2 + $0x8] sm:$0xff] %vm645, %v644
        $region76: #{tpu_custom_call.1} parent=71 // pred_fallthru
          _
        %v648 = vld [vmem:[#allocation2] sm:$0xff]
        %v649 = vld [vmem:[#allocation2 + $0x8] sm:$0xff]
        %v650 = vld [vmem:[%s596] sm:$0x1]
        %v651 = vld [vmem:[%s599] sm:$0x1]
        %v652 = vld [vmem:[%s618] sm:$0x1]
        %v653 = vld [vmem:[%s621] sm:$0x1]
        %v654 = vld [vmem:[%s607] sm:$0x1]
        %v655 = vld [vmem:[%s615] sm:$0x1]
        %v656 = vld [vmem:[%s637] sm:$0x1]
        %vm657 = vcmask 261120
        %v658 = vsel %vm657, %v648, 0.0
        %659 = vadd.xlane.f32.xlu0 %v658
        %v660 = vpop.xlane.xlu0 %659
        %v661 = vsel %vm657, %v649, 0.0
        %662 = vadd.xlane.f32.xlu0 %v661
        %v663 = vpop.xlane.xlu0 %662
        %v664 = vrcp.pop 32.0
        %v665 = vmul.f32 %v660, %v664
        %v666 = vmul.f32 %v663, %v664
        %v667 = vsub.f32 %v648, %v665
        %v668 = vsub.f32 %v649, %v666
        %v669 = vmul.f32 %v667, %v667
        %v670 = vmul.f32 %v668, %v668
        %v671 = vsel %vm657, %v669, 0.0
        %672 = vadd.xlane.f32.xlu0 %v671
        %v673 = vpop.xlane.xlu0 %672
        %v674 = vsel %vm657, %v670, 0.0
        %675 = vadd.xlane.f32.xlu0 %v674
        %v676 = vpop.xlane.xlu0 %675
        %v677 = vmul.f32 %v673, %v664
        %v678 = vmul.f32 %v676, %v664
        %v679 = vadd.f32 %v677, 1e-05
        %v680 = vadd.f32 %v678, 1e-05
        %v681 = vrsqrt.pop %v679
        %v682 = vrsqrt.pop %v680
        %v683 = vmul.f32 %v667, %v681
        %v684 = vmul.f32 %v668, %v682
        %v686 = vlaneseq
        %v687 = vshrl.u32 %v686, 7
        %v688 = vsub.s32 0, %v687
        %v689 = vrot.slane %v650, %v688
        %v691 = vmul.f32 %v683, %v689
        %v692 = vmul.f32 %v684, %v689
        %v694 = vlaneseq
        %v695 = vshrl.u32 %v694, 7
        %v696 = vsub.s32 0, %v695
        %v697 = vrot.slane %v651, %v696
        %v699 = vadd.f32 %v691, %v697
        %v700 = vadd.f32 %v692, %v697
        %v701 = vld [vmem:[%s604] sm:$0xff]
        %v702 = vld [vmem:[%s604 + $0x8] sm:$0xff]
        %v703 = vld [vmem:[%s604 + $0x10] sm:$0xff]
        %v704 = vld [vmem:[%s604 + $0x18] sm:$0xff]
        %v706 = vlaneseq
        %v707 = vshrl.u32 %v706, 7
        %v708 = vsub.s32 0, %v707
        %v709 = vrot.slane %v654, %v708
        %v712 = vsel %vm657, %v699, 0
        %v715 = vsel %vm657, %v700, 0
        %717 = vmatprep.subr.mxu0 0.0
        %718 = vmatpush1.msra.mxu0 %v701
        %719 = vmatprep.subr.mxu0 0.0
        %720 = vmatpush1.msra.mxu0 %v702
        %721 = vmatprep.subr.mxu0 0.0
        %722 = vmatpush1.msra.mxu0 %v703
        %723 = vmatprep.subr.mxu0 0.0
        %724 = vmatpush1.msra.mxu0 %v704
        %725 = vmatprep.subr.mxu0 0.0
        %726 = vmatpush1.msra.mxu0 0.0
        %727 = vmatprep.subr.mxu0 0.0
        %728 = vmatpush1.msra.mxu0 0.0
        %729 = vmatprep.subr.mxu0 0.0
        %730 = vmatpush1.msra.mxu0 0.0
        %731 = vmatprep.subr.mxu0 0.0
        %732 = vmatpush1.msra.mxu0 0.0
        %733 = vmatprep.subr.mxu0 0.0
        %734 = vmatpush1.msra.mxu0 0.0
        %735 = vmatprep.subr.mxu0 0.0
        %736 = vmatpush1.msra.mxu0 0.0
        %737 = vmatprep.subr.mxu0 0.0
        %738 = vmatpush1.msra.mxu0 0.0
        %739 = vmatprep.subr.mxu0 0.0
        %740 = vmatpush1.msra.mxu0 0.0
        %741 = vmatprep.subr.mxu0 0.0
        %742 = vmatpush1.msra.mxu0 0.0
        %743 = vmatprep.subr.mxu0 0.0
        %744 = vmatpush1.msra.mxu0 0.0
        %745 = vmatprep.subr.mxu0 0.0
        %746 = vmatpush1.msra.mxu0 0.0
        %747 = vmatprep.subr.mxu0 0.0
        %748 = vmatpush1.msra.mxu0 0.0
        %749 = vmatprep.subr.mxu0 0.0
        %750 = vmatpush1.msra.mxu0 0.0
        %751 = vmatprep.subr.mxu0 0.0
        %752 = vmatpush1.msra.mxu0 0.0
        %753 = vmatprep.subr.mxu0 0.0
        %754 = vmatpush1.msra.mxu0 0.0
        %755 = vmatprep.subr.mxu0 0.0
        %756 = vmatpush1.msra.mxu0 0.0
        %757 = vmatprep.subr.mxu0 0.0
        %758 = vmatpush1.msra.mxu0 0.0
        %759 = vmatprep.subr.mxu0 0.0
        %760 = vmatpush1.msra.mxu0 0.0
        %761 = vmatprep.subr.mxu0 0.0
        %762 = vmatpush1.msra.mxu0 0.0
        %763 = vmatprep.subr.mxu0 0.0
        %764 = vmatpush1.msra.mxu0 0.0
        %765 = vmatprep.subr.mxu0 0.0
        %766 = vmatpush1.msra.mxu0 0.0
        %767 = vmatprep.subr.mxu0 0.0
        %768 = vmatpush1.msra.mxu0 0.0
        %769 = vmatprep.subr.mxu0 0.0
        %770 = vmatpush1.msra.mxu0 0.0
        %771 = vmatprep.subr.mxu0 0.0
        %772 = vmatpush1.msra.mxu0 0.0
        %773 = vmatprep.subr.mxu0 0.0
        %774 = vmatpush1.msra.mxu0 0.0
        %775 = vmatprep.subr.mxu0 0.0
        %776 = vmatpush1.msra.mxu0 0.0
        %777 = vmatprep.subr.mxu0 0.0
        %778 = vmatpush1.msra.mxu0 0.0
        %779 = vmatprep.subr.mxu0 0.0
        %780 = vmatpush1.msra.mxu0 0.0
        %781 = vmatprep.mubr.f32.mxu0 0.0
        %782 = vmatmul.mubr.f32.gmra.mrb[0].mxu0 %v712
        %v783 = vpop.f32.mrb[0].mxu0
        %v784 = vadd.f32 %v709, %v783
        %v785 = vpop.f32.mrb[0].mxu0
        %786 = vmatprep.mubr.f32.mxu0 0.0
        %787 = vmatmul.mubr.f32.gmra.mrb[0].mxu0 %v715
        %v788 = vpop.f32.mrb[0].mxu0
        %v789 = vadd.f32 %v709, %v788
        %v790 = vpop.f32.mrb[0].mxu0
        %791 = vdwg.mxu0
        %794 = vrot.lane.b32.xlu0 %v784, 120
        %v795 = vpop.permute.xlu0 %794
        %796 = vrot.lane.b32.xlu0 %v789, 120
        %v797 = vpop.permute.xlu0 %796
        %798 = vrot.lane.b32.xlu0 %v784, 112
        %v799 = vpop.permute.xlu0 %798
        %800 = vrot.lane.b32.xlu0 %v789, 112
        %v801 = vpop.permute.xlu0 %800
        %802 = vrot.lane.b32.xlu0 %v784, 104
        %v803 = vpop.permute.xlu0 %802
        %804 = vrot.lane.b32.xlu0 %v789, 104
        %v805 = vpop.permute.xlu0 %804
        %806 = vrot.lane.b32.xlu0 %v784, 96
        %v807 = vpop.permute.xlu0 %806
        %vm808 = vcmask 64512
        %v809 = vsel %vm808, %v784, 0
        %v811 = vsel %vm808, %v807, 0
        %813 = vmatprep.subr.mxu0 0.0
        %814 = vmatpush1.xpose.msra.mxu0 %v811
        %815 = vmatprep.subr.mxu0 0.0
        %816 = vmatpush1.xpose.msra.mxu0 0.0
        %817 = vmatprep.subr.mxu0 0.0
        %818 = vmatpush1.xpose.msra.mxu0 0.0
        %819 = vmatprep.subr.mxu0 0.0
        %820 = vmatpush1.xpose.msra.mxu0 0.0
        %821 = vmatprep.subr.mxu0 0.0
        %822 = vmatpush1.xpose.msra.mxu0 0.0
        %823 = vmatprep.subr.mxu0 0.0
        %824 = vmatpush1.xpose.msra.mxu0 0.0
        %825 = vmatprep.subr.mxu0 0.0
        %826 = vmatpush1.xpose.msra.mxu0 0.0
        %827 = vmatprep.subr.mxu0 0.0
        %828 = vmatpush1.xpose.msra.mxu0 0.0
        %829 = vmatprep.subr.mxu0 0.0
        %830 = vmatpush1.xpose.msra.mxu0 0.0
        %831 = vmatprep.subr.mxu0 0.0
        %832 = vmatpush1.xpose.msra.mxu0 0.0
        %833 = vmatprep.subr.mxu0 0.0
        %834 = vmatpush1.xpose.msra.mxu0 0.0
        %835 = vmatprep.subr.mxu0 0.0
        %836 = vmatpush1.xpose.msra.mxu0 0.0
        %837 = vmatprep.subr.mxu0 0.0
        %838 = vmatpush1.xpose.msra.mxu0 0.0
        %839 = vmatprep.subr.mxu0 0.0
        %840 = vmatpush1.xpose.msra.mxu0 0.0
        %841 = vmatprep.subr.mxu0 0.0
        %842 = vmatpush1.xpose.msra.mxu0 0.0
        %843 = vmatprep.subr.mxu0 0.0
        %844 = vmatpush1.xpose.msra.mxu0 0.0
        %845 = vmatprep.subr.mxu0 0.0
        %846 = vmatpush1.xpose.msra.mxu0 0.0
        %847 = vmatprep.subr.mxu0 0.0
        %848 = vmatpush1.xpose.msra.mxu0 0.0
        %849 = vmatprep.subr.mxu0 0.0
        %850 = vmatpush1.xpose.msra.mxu0 0.0
        %851 = vmatprep.subr.mxu0 0.0
        %852 = vmatpush1.xpose.msra.mxu0 0.0
        %853 = vmatprep.subr.mxu0 0.0
        %854 = vmatpush1.xpose.msra.mxu0 0.0
        %855 = vmatprep.subr.mxu0 0.0
        %856 = vmatpush1.xpose.msra.mxu0 0.0
        %857 = vmatprep.subr.mxu0 0.0
        %858 = vmatpush1.xpose.msra.mxu0 0.0
        %859 = vmatprep.subr.mxu0 0.0
        %860 = vmatpush1.xpose.msra.mxu0 0.0
        %861 = vmatprep.subr.mxu0 0.0
        %862 = vmatpush1.xpose.msra.mxu0 0.0
        %863 = vmatprep.subr.mxu0 0.0
        %864 = vmatpush1.xpose.msra.mxu0 0.0
        %865 = vmatprep.subr.mxu0 0.0
        %866 = vmatpush1.xpose.msra.mxu0 0.0
        %867 = vmatprep.subr.mxu0 0.0
        %868 = vmatpush1.xpose.msra.mxu0 0.0
        %869 = vmatprep.subr.mxu0 0.0
        %870 = vmatpush1.xpose.msra.mxu0 0.0
        %871 = vmatprep.subr.mxu0 0.0
        %872 = vmatpush1.xpose.msra.mxu0 0.0
        %873 = vmatprep.subr.mxu0 0.0
        %874 = vmatpush1.xpose.msra.mxu0 0.0
        %875 = vmatprep.subr.mxu0 0.0
        %876 = vmatpush1.xpose.msra.mxu0 0.0
        %877 = vmatprep.mubr.f32.mxu0 0.0
        %878 = vmatmul.mubr.f32.gmra.mrb[0].mxu0 %v809
        %v879 = vpop.f32.mrb[0].mxu0
        %v880 = vadd.f32 0.0, %v879
        %v881 = vpop.f32.mrb[0].mxu0
        %882 = vdwg.mxu0
        %883 = vrot.lane.b32.xlu0 %v789, 96
        %v884 = vpop.permute.xlu0 %883
        %v885 = vsel %vm808, %v789, 0
        %v887 = vsel %vm808, %v884, 0
        %889 = vmatprep.subr.mxu0 0.0
        %890 = vmatpush1.xpose.msra.mxu0 %v887
        %891 = vmatprep.subr.mxu0 0.0
        %892 = vmatpush1.xpose.msra.mxu0 0.0
        %893 = vmatprep.subr.mxu0 0.0
        %894 = vmatpush1.xpose.msra.mxu0 0.0
        %895 = vmatprep.subr.mxu0 0.0
        %896 = vmatpush1.xpose.msra.mxu0 0.0
        %897 = vmatprep.subr.mxu0 0.0
        %898 = vmatpush1.xpose.msra.mxu0 0.0
        %899 = vmatprep.subr.mxu0 0.0
        %900 = vmatpush1.xpose.msra.mxu0 0.0
        %901 = vmatprep.subr.mxu0 0.0
        %902 = vmatpush1.xpose.msra.mxu0 0.0
        %903 = vmatprep.subr.mxu0 0.0
        %904 = vmatpush1.xpose.msra.mxu0 0.0
        %905 = vmatprep.subr.mxu0 0.0
        %906 = vmatpush1.xpose.msra.mxu0 0.0
        %907 = vmatprep.subr.mxu0 0.0
        %908 = vmatpush1.xpose.msra.mxu0 0.0
        %909 = vmatprep.subr.mxu0 0.0
        %910 = vmatpush1.xpose.msra.mxu0 0.0
        %911 = vmatprep.subr.mxu0 0.0
        %912 = vmatpush1.xpose.msra.mxu0 0.0
        %913 = vmatprep.subr.mxu0 0.0
        %914 = vmatpush1.xpose.msra.mxu0 0.0
        %915 = vmatprep.subr.mxu0 0.0
        %916 = vmatpush1.xpose.msra.mxu0 0.0
        %917 = vmatprep.subr.mxu0 0.0
        %918 = vmatpush1.xpose.msra.mxu0 0.0
        %919 = vmatprep.subr.mxu0 0.0
        %920 = vmatpush1.xpose.msra.mxu0 0.0
        %921 = vmatprep.subr.mxu0 0.0
        %922 = vmatpush1.xpose.msra.mxu0 0.0
        %923 = vmatprep.subr.mxu0 0.0
        %924 = vmatpush1.xpose.msra.mxu0 0.0
        %925 = vmatprep.subr.mxu0 0.0
        %926 = vmatpush1.xpose.msra.mxu0 0.0
        %927 = vmatprep.subr.mxu0 0.0
        %928 = vmatpush1.xpose.msra.mxu0 0.0
        %929 = vmatprep.subr.mxu0 0.0
        %930 = vmatpush1.xpose.msra.mxu0 0.0
        %931 = vmatprep.subr.mxu0 0.0
        %932 = vmatpush1.xpose.msra.mxu0 0.0
        %933 = vmatprep.subr.mxu0 0.0
        %934 = vmatpush1.xpose.msra.mxu0 0.0
        %935 = vmatprep.subr.mxu0 0.0
        %936 = vmatpush1.xpose.msra.mxu0 0.0
        %937 = vmatprep.subr.mxu0 0.0
        %938 = vmatpush1.xpose.msra.mxu0 0.0
        %939 = vmatprep.subr.mxu0 0.0
        %940 = vmatpush1.xpose.msra.mxu0 0.0
        %941 = vmatprep.subr.mxu0 0.0
        %942 = vmatpush1.xpose.msra.mxu0 0.0
        %943 = vmatprep.subr.mxu0 0.0
        %944 = vmatpush1.xpose.msra.mxu0 0.0
        %945 = vmatprep.subr.mxu0 0.0
        %946 = vmatpush1.xpose.msra.mxu0 0.0
        %947 = vmatprep.subr.mxu0 0.0
        %948 = vmatpush1.xpose.msra.mxu0 0.0
        %949 = vmatprep.subr.mxu0 0.0
        %950 = vmatpush1.xpose.msra.mxu0 0.0
        %951 = vmatprep.subr.mxu0 0.0
        %952 = vmatpush1.xpose.msra.mxu0 0.0
        %953 = vmatprep.mubr.f32.mxu0 0.0
        %954 = vmatmul.mubr.f32.gmra.mrb[0].mxu0 %v885
        %v955 = vpop.f32.mrb[0].mxu0
        %v956 = vadd.f32 0.0, %v955
        %v957 = vpop.f32.mrb[0].mxu0
        %958 = vdwg.mxu0
        %959 = vrot.lane.b32.xlu0 %v795, 96
        %v960 = vpop.permute.xlu0 %959
        %v961 = vsel %vm808, %v795, 0
        %v963 = vsel %vm808, %v960, 0
        %965 = vmatprep.subr.mxu0 0.0
        %966 = vmatpush1.xpose.msra.mxu0 %v963
        %967 = vmatprep.subr.mxu0 0.0
        %968 = vmatpush1.xpose.msra.mxu0 0.0
        %969 = vmatprep.subr.mxu0 0.0
        %970 = vmatpush1.xpose.msra.mxu0 0.0
        %971 = vmatprep.subr.mxu0 0.0
        %972 = vmatpush1.xpose.msra.mxu0 0.0
        %973 = vmatprep.subr.mxu0 0.0
        %974 = vmatpush1.xpose.msra.mxu0 0.0
        %975 = vmatprep.subr.mxu0 0.0
        %976 = vmatpush1.xpose.msra.mxu0 0.0
        %977 = vmatprep.subr.mxu0 0.0
        %978 = vmatpush1.xpose.msra.mxu0 0.0
        %979 = vmatprep.subr.mxu0 0.0
        %980 = vmatpush1.xpose.msra.mxu0 0.0
        %981 = vmatprep.subr.mxu0 0.0
        %982 = vmatpush1.xpose.msra.mxu0 0.0
        %983 = vmatprep.subr.mxu0 0.0
        %984 = vmatpush1.xpose.msra.mxu0 0.0
        %985 = vmatprep.subr.mxu0 0.0
        %986 = vmatpush1.xpose.msra.mxu0 0.0
        %987 = vmatprep.subr.mxu0 0.0
        %988 = vmatpush1.xpose.msra.mxu0 0.0
        %989 = vmatprep.subr.mxu0 0.0
        %990 = vmatpush1.xpose.msra.mxu0 0.0
        %991 = vmatprep.subr.mxu0 0.0
        %992 = vmatpush1.xpose.msra.mxu0 0.0
        %993 = vmatprep.subr.mxu0 0.0
        %994 = vmatpush1.xpose.msra.mxu0 0.0
        %995 = vmatprep.subr.mxu0 0.0
        %996 = vmatpush1.xpose.msra.mxu0 0.0
        %997 = vmatprep.subr.mxu0 0.0
        %998 = vmatpush1.xpose.msra.mxu0 0.0
        %999 = vmatprep.subr.mxu0 0.0
        %1000 = vmatpush1.xpose.msra.mxu0 0.0
        %1001 = vmatprep.subr.mxu0 0.0
        %1002 = vmatpush1.xpose.msra.mxu0 0.0
        %1003 = vmatprep.subr.mxu0 0.0
        %1004 = vmatpush1.xpose.msra.mxu0 0.0
        %1005 = vmatprep.subr.mxu0 0.0
        %1006 = vmatpush1.xpose.msra.mxu0 0.0
        %1007 = vmatprep.subr.mxu0 0.0
        %1008 = vmatpush1.xpose.msra.mxu0 0.0
        %1009 = vmatprep.subr.mxu0 0.0
        %1010 = vmatpush1.xpose.msra.mxu0 0.0
        %1011 = vmatprep.subr.mxu0 0.0
        %1012 = vmatpush1.xpose.msra.mxu0 0.0
        %1013 = vmatprep.subr.mxu0 0.0
        %1014 = vmatpush1.xpose.msra.mxu0 0.0
        %1015 = vmatprep.subr.mxu0 0.0
        %1016 = vmatpush1.xpose.msra.mxu0 0.0
        %1017 = vmatprep.subr.mxu0 0.0
        %1018 = vmatpush1.xpose.msra.mxu0 0.0
        %1019 = vmatprep.subr.mxu0 0.0
        %1020 = vmatpush1.xpose.msra.mxu0 0.0
        %1021 = vmatprep.subr.mxu0 0.0
        %1022 = vmatpush1.xpose.msra.mxu0 0.0
        %1023 = vmatprep.subr.mxu0 0.0
        %1024 = vmatpush1.xpose.msra.mxu0 0.0
        %1025 = vmatprep.subr.mxu0 0.0
        %1026 = vmatpush1.xpose.msra.mxu0 0.0
        %1027 = vmatprep.subr.mxu0 0.0
        %1028 = vmatpush1.xpose.msra.mxu0 0.0
        %1029 = vmatprep.mubr.f32.mxu0 0.0
        %1030 = vmatmul.mubr.f32.gmra.mrb[0].mxu0 %v961
        %v1031 = vpop.f32.mrb[0].mxu0
        %v1032 = vadd.f32 0.0, %v1031
        %v1033 = vpop.f32.mrb[0].mxu0
        %1034 = vdwg.mxu0
        %1035 = vrot.lane.b32.xlu0 %v797, 96
        %v1036 = vpop.permute.xlu0 %1035
        %v1037 = vsel %vm808, %v797, 0
        %v1039 = vsel %vm808, %v1036, 0
        %1041 = vmatprep.subr.mxu0 0.0
        %1042 = vmatpush1.xpose.msra.mxu0 %v1039
        %1043 = vmatprep.subr.mxu0 0.0
        %1044 = vmatpush1.xpose.msra.mxu0 0.0
        %1045 = vmatprep.subr.mxu0 0.0
        %1046 = vmatpush1.xpose.msra.mxu0 0.0
        %1047 = vmatprep.subr.mxu0 0.0
        %1048 = vmatpush1.xpose.msra.mxu0 0.0
        %1049 = vmatprep.subr.mxu0 0.0
        %1050 = vmatpush1.xpose.msra.mxu0 0.0
        %1051 = vmatprep.subr.mxu0 0.0
        %1052 = vmatpush1.xpose.msra.mxu0 0.0
        %1053 = vmatprep.subr.mxu0 0.0
        %1054 = vmatpush1.xpose.msra.mxu0 0.0
        %1055 = vmatprep.subr.mxu0 0.0
        %1056 = vmatpush1.xpose.msra.mxu0 0.0
        %1057 = vmatprep.subr.mxu0 0.0
        %1058 = vmatpush1.xpose.msra.mxu0 0.0
        %1059 = vmatprep.subr.mxu0 0.0
        %1060 = vmatpush1.xpose.msra.mxu0 0.0
        %1061 = vmatprep.subr.mxu0 0.0
        %1062 = vmatpush1.xpose.msra.mxu0 0.0
        %1063 = vmatprep.subr.mxu0 0.0
        %1064 = vmatpush1.xpose.msra.mxu0 0.0
        %1065 = vmatprep.subr.mxu0 0.0
        %1066 = vmatpush1.xpose.msra.mxu0 0.0
        %1067 = vmatprep.subr.mxu0 0.0
        %1068 = vmatpush1.xpose.msra.mxu0 0.0
        %1069 = vmatprep.subr.mxu0 0.0
        %1070 = vmatpush1.xpose.msra.mxu0 0.0
        %1071 = vmatprep.subr.mxu0 0.0
        %1072 = vmatpush1.xpose.msra.mxu0 0.0
        %1073 = vmatprep.subr.mxu0 0.0
        %1074 = vmatpush1.xpose.msra.mxu0 0.0
        %1075 = vmatprep.subr.mxu0 0.0
        %1076 = vmatpush1.xpose.msra.mxu0 0.0
        %1077 = vmatprep.subr.mxu0 0.0
        %1078 = vmatpush1.xpose.msra.mxu0 0.0
        %1079 = vmatprep.subr.mxu0 0.0
        %1080 = vmatpush1.xpose.msra.mxu0 0.0
        %1081 = vmatprep.subr.mxu0 0.0
        %1082 = vmatpush1.xpose.msra.mxu0 0.0
        %1083 = vmatprep.subr.mxu0 0.0
        %1084 = vmatpush1.xpose.msra.mxu0 0.0
        %1085 = vmatprep.subr.mxu0 0.0
        %1086 = vmatpush1.xpose.msra.mxu0 0.0
        %1087 = vmatprep.subr.mxu0 0.0
        %1088 = vmatpush1.xpose.msra.mxu0 0.0
        %1089 = vmatprep.subr.mxu0 0.0
        %1090 = vmatpush1.xpose.msra.mxu0 0.0
        %1091 = vmatprep.subr.mxu0 0.0
        %1092 = vmatpush1.xpose.msra.mxu0 0.0
        %1093 = vmatprep.subr.mxu0 0.0
        %1094 = vmatpush1.xpose.msra.mxu0 0.0
        %1095 = vmatprep.subr.mxu0 0.0
        %1096 = vmatpush1.xpose.msra.mxu0 0.0
        %1097 = vmatprep.subr.mxu0 0.0
        %1098 = vmatpush1.xpose.msra.mxu0 0.0
        %1099 = vmatprep.subr.mxu0 0.0
        %1100 = vmatpush1.xpose.msra.mxu0 0.0
        %1101 = vmatprep.subr.mxu0 0.0
        %1102 = vmatpush1.xpose.msra.mxu0 0.0
        %1103 = vmatprep.subr.mxu0 0.0
        %1104 = vmatpush1.xpose.msra.mxu0 0.0
        %1105 = vmatprep.mubr.f32.mxu0 0.0
        %1106 = vmatmul.mubr.f32.gmra.mrb[0].mxu0 %v1037
        %v1107 = vpop.f32.mrb[0].mxu0
        %v1108 = vadd.f32 0.0, %v1107
        %v1109 = vpop.f32.mrb[0].mxu0
        %1110 = vdwg.mxu0
        %1111 = vrot.lane.b32.xlu0 %v799, 96
        %v1112 = vpop.permute.xlu0 %1111
        %v1113 = vsel %vm808, %v799, 0
        %v1115 = vsel %vm808, %v1112, 0
        %1117 = vmatprep.subr.mxu0 0.0
        %1118 = vmatpush1.xpose.msra.mxu0 %v1115
        %1119 = vmatprep.subr.mxu0 0.0
        %1120 = vmatpush1.xpose.msra.mxu0 0.0
        %1121 = vmatprep.subr.mxu0 0.0
        %1122 = vmatpush1.xpose.msra.mxu0 0.0
        %1123 = vmatprep.subr.mxu0 0.0
        %1124 = vmatpush1.xpose.msra.mxu0 0.0
        %1125 = vmatprep.subr.mxu0 0.0
        %1126 = vmatpush1.xpose.msra.mxu0 0.0
        %1127 = vmatprep.subr.mxu0 0.0
        %1128 = vmatpush1.xpose.msra.mxu0 0.0
        %1129 = vmatprep.subr.mxu0 0.0
        %1130 = vmatpush1.xpose.msra.mxu0 0.0
        %1131 = vmatprep.subr.mxu0 0.0
        %1132 = vmatpush1.xpose.msra.mxu0 0.0
        %1133 = vmatprep.subr.mxu0 0.0
        %1134 = vmatpush1.xpose.msra.mxu0 0.0
        %1135 = vmatprep.subr.mxu0 0.0
        %1136 = vmatpush1.xpose.msra.mxu0 0.0
        %1137 = vmatprep.subr.mxu0 0.0
        %1138 = vmatpush1.xpose.msra.mxu0 0.0
        %1139 = vmatprep.subr.mxu0 0.0
        %1140 = vmatpush1.xpose.msra.mxu0 0.0
        %1141 = vmatprep.subr.mxu0 0.0
        %1142 = vmatpush1.xpose.msra.mxu0 0.0
        %1143 = vmatprep.subr.mxu0 0.0
        %1144 = vmatpush1.xpose.msra.mxu0 0.0
        %1145 = vmatprep.subr.mxu0 0.0
        %1146 = vmatpush1.xpose.msra.mxu0 0.0
        %1147 = vmatprep.subr.mxu0 0.0
        %1148 = vmatpush1.xpose.msra.mxu0 0.0
        %1149 = vmatprep.subr.mxu0 0.0
        %1150 = vmatpush1.xpose.msra.mxu0 0.0
        %1151 = vmatprep.subr.mxu0 0.0
        %1152 = vmatpush1.xpose.msra.mxu0 0.0
        %1153 = vmatprep.subr.mxu0 0.0
        %1154 = vmatpush1.xpose.msra.mxu0 0.0
        %1155 = vmatprep.subr.mxu0 0.0
        %1156 = vmatpush1.xpose.msra.mxu0 0.0
        %1157 = vmatprep.subr.mxu0 0.0
        %1158 = vmatpush1.xpose.msra.mxu0 0.0
        %1159 = vmatprep.subr.mxu0 0.0
        %1160 = vmatpush1.xpose.msra.mxu0 0.0
        %1161 = vmatprep.subr.mxu0 0.0
        %1162 = vmatpush1.xpose.msra.mxu0 0.0
        %1163 = vmatprep.subr.mxu0 0.0
        %1164 = vmatpush1.xpose.msra.mxu0 0.0
        %1165 = vmatprep.subr.mxu0 0.0
        %1166 = vmatpush1.xpose.msra.mxu0 0.0
        %1167 = vmatprep.subr.mxu0 0.0
        %1168 = vmatpush1.xpose.msra.mxu0 0.0
        %1169 = vmatprep.subr.mxu0 0.0
        %1170 = vmatpush1.xpose.msra.mxu0 0.0
        %1171 = vmatprep.subr.mxu0 0.0
        %1172 = vmatpush1.xpose.msra.mxu0 0.0
        %1173 = vmatprep.subr.mxu0 0.0
        %1174 = vmatpush1.xpose.msra.mxu0 0.0
        %1175 = vmatprep.subr.mxu0 0.0
        %1176 = vmatpush1.xpose.msra.mxu0 0.0
        %1177 = vmatprep.subr.mxu0 0.0
        %1178 = vmatpush1.xpose.msra.mxu0 0.0
        %1179 = vmatprep.subr.mxu0 0.0
        %1180 = vmatpush1.xpose.msra.mxu0 0.0
        %1181 = vmatprep.mubr.f32.mxu0 0.0
        %1182 = vmatmul.mubr.f32.gmra.mrb[0].mxu0 %v1113
        %v1183 = vpop.f32.mrb[0].mxu0
        %v1184 = vadd.f32 0.0, %v1183
        %v1185 = vpop.f32.mrb[0].mxu0
        %1186 = vdwg.mxu0
        %1187 = vrot.lane.b32.xlu0 %v801, 96
        %v1188 = vpop.permute.xlu0 %1187
        %v1189 = vsel %vm808, %v801, 0
        %v1191 = vsel %vm808, %v1188, 0
        %1193 = vmatprep.subr.mxu0 0.0
        %1194 = vmatpush1.xpose.msra.mxu0 %v1191
        %1195 = vmatprep.subr.mxu0 0.0
        %1196 = vmatpush1.xpose.msra.mxu0 0.0
        %1197 = vmatprep.subr.mxu0 0.0
        %1198 = vmatpush1.xpose.msra.mxu0 0.0
        %1199 = vmatprep.subr.mxu0 0.0
        %1200 = vmatpush1.xpose.msra.mxu0 0.0
        %1201 = vmatprep.subr.mxu0 0.0
        %1202 = vmatpush1.xpose.msra.mxu0 0.0
        %1203 = vmatprep.subr.mxu0 0.0
        %1204 = vmatpush1.xpose.msra.mxu0 0.0
        %1205 = vmatprep.subr.mxu0 0.0
        %1206 = vmatpush1.xpose.msra.mxu0 0.0
        %1207 = vmatprep.subr.mxu0 0.0
        %1208 = vmatpush1.xpose.msra.mxu0 0.0
        %1209 = vmatprep.subr.mxu0 0.0
        %1210 = vmatpush1.xpose.msra.mxu0 0.0
        %1211 = vmatprep.subr.mxu0 0.0
        %1212 = vmatpush1.xpose.msra.mxu0 0.0
        %1213 = vmatprep.subr.mxu0 0.0
        %1214 = vmatpush1.xpose.msra.mxu0 0.0
        %1215 = vmatprep.subr.mxu0 0.0
        %1216 = vmatpush1.xpose.msra.mxu0 0.0
        %1217 = vmatprep.subr.mxu0 0.0
        %1218 = vmatpush1.xpose.msra.mxu0 0.0
        %1219 = vmatprep.subr.mxu0 0.0
        %1220 = vmatpush1.xpose.msra.mxu0 0.0
        %1221 = vmatprep.subr.mxu0 0.0
        %1222 = vmatpush1.xpose.msra.mxu0 0.0
        %1223 = vmatprep.subr.mxu0 0.0
        %1224 = vmatpush1.xpose.msra.mxu0 0.0
        %1225 = vmatprep.subr.mxu0 0.0
        %1226 = vmatpush1.xpose.msra.mxu0 0.0
        %1227 = vmatprep.subr.mxu0 0.0
        %1228 = vmatpush1.xpose.msra.mxu0 0.0
        %1229 = vmatprep.subr.mxu0 0.0
        %1230 = vmatpush1.xpose.msra.mxu0 0.0
        %1231 = vmatprep.subr.mxu0 0.0
        %1232 = vmatpush1.xpose.msra.mxu0 0.0
        %1233 = vmatprep.subr.mxu0 0.0
        %1234 = vmatpush1.xpose.msra.mxu0 0.0
        %1235 = vmatprep.subr.mxu0 0.0
        %1236 = vmatpush1.xpose.msra.mxu0 0.0
        %1237 = vmatprep.subr.mxu0 0.0
        %1238 = vmatpush1.xpose.msra.mxu0 0.0
        %1239 = vmatprep.subr.mxu0 0.0
        %1240 = vmatpush1.xpose.msra.mxu0 0.0
        %1241 = vmatprep.subr.mxu0 0.0
        %1242 = vmatpush1.xpose.msra.mxu0 0.0
        %1243 = vmatprep.subr.mxu0 0.0
        %1244 = vmatpush1.xpose.msra.mxu0 0.0
        %1245 = vmatprep.subr.mxu0 0.0
        %1246 = vmatpush1.xpose.msra.mxu0 0.0
        %1247 = vmatprep.subr.mxu0 0.0
        %1248 = vmatpush1.xpose.msra.mxu0 0.0
        %1249 = vmatprep.subr.mxu0 0.0
        %1250 = vmatpush1.xpose.msra.mxu0 0.0
        %1251 = vmatprep.subr.mxu0 0.0
        %1252 = vmatpush1.xpose.msra.mxu0 0.0
        %1253 = vmatprep.subr.mxu0 0.0
        %1254 = vmatpush1.xpose.msra.mxu0 0.0
        %1255 = vmatprep.subr.mxu0 0.0
        %1256 = vmatpush1.xpose.msra.mxu0 0.0
        %1257 = vmatprep.mubr.f32.mxu0 0.0
        %1258 = vmatmul.mubr.f32.gmra.mrb[0].mxu0 %v1189
        %v1259 = vpop.f32.mrb[0].mxu0
        %v1260 = vadd.f32 0.0, %v1259
        %v1261 = vpop.f32.mrb[0].mxu0
        %1262 = vdwg.mxu0
        %1263 = vrot.lane.b32.xlu0 %v803, 96
        %v1264 = vpop.permute.xlu0 %1263
        %v1265 = vsel %vm808, %v803, 0
        %v1267 = vsel %vm808, %v1264, 0
        %1269 = vmatprep.subr.mxu0 0.0
        %1270 = vmatpush1.xpose.msra.mxu0 %v1267
        %1271 = vmatprep.subr.mxu0 0.0
        %1272 = vmatpush1.xpose.msra.mxu0 0.0
        %1273 = vmatprep.subr.mxu0 0.0
        %1274 = vmatpush1.xpose.msra.mxu0 0.0
        %1275 = vmatprep.subr.mxu0 0.0
        %1276 = vmatpush1.xpose.msra.mxu0 0.0
        %1277 = vmatprep.subr.mxu0 0.0
        %1278 = vmatpush1.xpose.msra.mxu0 0.0
        %1279 = vmatprep.subr.mxu0 0.0
        %1280 = vmatpush1.xpose.msra.mxu0 0.0
        %1281 = vmatprep.subr.mxu0 0.0
        %1282 = vmatpush1.xpose.msra.mxu0 0.0
        %1283 = vmatprep.subr.mxu0 0.0
        %1284 = vmatpush1.xpose.msra.mxu0 0.0
        %1285 = vmatprep.subr.mxu0 0.0
        %1286 = vmatpush1.xpose.msra.mxu0 0.0
        %1287 = vmatprep.subr.mxu0 0.0
        %1288 = vmatpush1.xpose.msra.mxu0 0.0
        %1289 = vmatprep.subr.mxu0 0.0
        %1290 = vmatpush1.xpose.msra.mxu0 0.0
        %1291 = vmatprep.subr.mxu0 0.0
        %1292 = vmatpush1.xpose.msra.mxu0 0.0
        %1293 = vmatprep.subr.mxu0 0.0
        %1294 = vmatpush1.xpose.msra.mxu0 0.0
        %1295 = vmatprep.subr.mxu0 0.0
        %1296 = vmatpush1.xpose.msra.mxu0 0.0
        %1297 = vmatprep.subr.mxu0 0.0
        %1298 = vmatpush1.xpose.msra.mxu0 0.0
        %1299 = vmatprep.subr.mxu0 0.0
        %1300 = vmatpush1.xpose.msra.mxu0 0.0
        %1301 = vmatprep.subr.mxu0 0.0
        %1302 = vmatpush1.xpose.msra.mxu0 0.0
        %1303 = vmatprep.subr.mxu0 0.0
        %1304 = vmatpush1.xpose.msra.mxu0 0.0
        %1305 = vmatprep.subr.mxu0 0.0
        %1306 = vmatpush1.xpose.msra.mxu0 0.0
        %1307 = vmatprep.subr.mxu0 0.0
        %1308 = vmatpush1.xpose.msra.mxu0 0.0
        %1309 = vmatprep.subr.mxu0 0.0
        %1310 = vmatpush1.xpose.msra.mxu0 0.0
        %1311 = vmatprep.subr.mxu0 0.0
        %1312 = vmatpush1.xpose.msra.mxu0 0.0
        %1313 = vmatprep.subr.mxu0 0.0
        %1314 = vmatpush1.xpose.msra.mxu0 0.0
        %1315 = vmatprep.subr.mxu0 0.0
        %1316 = vmatpush1.xpose.msra.mxu0 0.0
        %1317 = vmatprep.subr.mxu0 0.0
        %1318 = vmatpush1.xpose.msra.mxu0 0.0
        %1319 = vmatprep.subr.mxu0 0.0
        %1320 = vmatpush1.xpose.msra.mxu0 0.0
        %1321 = vmatprep.subr.mxu0 0.0
        %1322 = vmatpush1.xpose.msra.mxu0 0.0
        %1323 = vmatprep.subr.mxu0 0.0
        %1324 = vmatpush1.xpose.msra.mxu0 0.0
        %1325 = vmatprep.subr.mxu0 0.0
        %1326 = vmatpush1.xpose.msra.mxu0 0.0
        %1327 = vmatprep.subr.mxu0 0.0
        %1328 = vmatpush1.xpose.msra.mxu0 0.0
        %1329 = vmatprep.subr.mxu0 0.0
        %1330 = vmatpush1.xpose.msra.mxu0 0.0
        %1331 = vmatprep.subr.mxu0 0.0
        %1332 = vmatpush1.xpose.msra.mxu0 0.0
        %1333 = vmatprep.mubr.f32.mxu0 0.0
        %1334 = vmatmul.mubr.f32.gmra.mrb[0].mxu0 %v1265
        %v1335 = vpop.f32.mrb[0].mxu0
        %v1336 = vadd.f32 0.0, %v1335
        %v1337 = vpop.f32.mrb[0].mxu0
        %1338 = vdwg.mxu0
        %1339 = vrot.lane.b32.xlu0 %v805, 96
        %v1340 = vpop.permute.xlu0 %1339
        %v1341 = vsel %vm808, %v805, 0
        %v1343 = vsel %vm808, %v1340, 0
        %1345 = vmatprep.subr.mxu0 0.0
        %1346 = vmatpush1.xpose.msra.mxu0 %v1343
        %1347 = vmatprep.subr.mxu0 0.0
        %1348 = vmatpush1.xpose.msra.mxu0 0.0
        %1349 = vmatprep.subr.mxu0 0.0
        %1350 = vmatpush1.xpose.msra.mxu0 0.0
        %1351 = vmatprep.subr.mxu0 0.0
        %1352 = vmatpush1.xpose.msra.mxu0 0.0
        %1353 = vmatprep.subr.mxu0 0.0
        %1354 = vmatpush1.xpose.msra.mxu0 0.0
        %1355 = vmatprep.subr.mxu0 0.0
        %1356 = vmatpush1.xpose.msra.mxu0 0.0
        %1357 = vmatprep.subr.mxu0 0.0
        %1358 = vmatpush1.xpose.msra.mxu0 0.0
        %1359 = vmatprep.subr.mxu0 0.0
        %1360 = vmatpush1.xpose.msra.mxu0 0.0
        %1361 = vmatprep.subr.mxu0 0.0
        %1362 = vmatpush1.xpose.msra.mxu0 0.0
        %1363 = vmatprep.subr.mxu0 0.0
        %1364 = vmatpush1.xpose.msra.mxu0 0.0
        %1365 = vmatprep.subr.mxu0 0.0
        %1366 = vmatpush1.xpose.msra.mxu0 0.0
        %1367 = vmatprep.subr.mxu0 0.0
        %1368 = vmatpush1.xpose.msra.mxu0 0.0
        %1369 = vmatprep.subr.mxu0 0.0
        %1370 = vmatpush1.xpose.msra.mxu0 0.0
        %1371 = vmatprep.subr.mxu0 0.0
        %1372 = vmatpush1.xpose.msra.mxu0 0.0
        %1373 = vmatprep.subr.mxu0 0.0
        %1374 = vmatpush1.xpose.msra.mxu0 0.0
        %1375 = vmatprep.subr.mxu0 0.0
        %1376 = vmatpush1.xpose.msra.mxu0 0.0
        %1377 = vmatprep.subr.mxu0 0.0
        %1378 = vmatpush1.xpose.msra.mxu0 0.0
        %1379 = vmatprep.subr.mxu0 0.0
        %1380 = vmatpush1.xpose.msra.mxu0 0.0
        %1381 = vmatprep.subr.mxu0 0.0
        %1382 = vmatpush1.xpose.msra.mxu0 0.0
        %1383 = vmatprep.subr.mxu0 0.0
        %1384 = vmatpush1.xpose.msra.mxu0 0.0
        %1385 = vmatprep.subr.mxu0 0.0
        %1386 = vmatpush1.xpose.msra.mxu0 0.0
        %1387 = vmatprep.subr.mxu0 0.0
        %1388 = vmatpush1.xpose.msra.mxu0 0.0
        %1389 = vmatprep.subr.mxu0 0.0
        %1390 = vmatpush1.xpose.msra.mxu0 0.0
        %1391 = vmatprep.subr.mxu0 0.0
        %1392 = vmatpush1.xpose.msra.mxu0 0.0
        %1393 = vmatprep.subr.mxu0 0.0
        %1394 = vmatpush1.xpose.msra.mxu0 0.0
        %1395 = vmatprep.subr.mxu0 0.0
        %1396 = vmatpush1.xpose.msra.mxu0 0.0
        %1397 = vmatprep.subr.mxu0 0.0
        %1398 = vmatpush1.xpose.msra.mxu0 0.0
        %1399 = vmatprep.subr.mxu0 0.0
        %1400 = vmatpush1.xpose.msra.mxu0 0.0
        %1401 = vmatprep.subr.mxu0 0.0
        %1402 = vmatpush1.xpose.msra.mxu0 0.0
        %1403 = vmatprep.subr.mxu0 0.0
        %1404 = vmatpush1.xpose.msra.mxu0 0.0
        %1405 = vmatprep.subr.mxu0 0.0
        %1406 = vmatpush1.xpose.msra.mxu0 0.0
        %1407 = vmatprep.subr.mxu0 0.0
        %1408 = vmatpush1.xpose.msra.mxu0 0.0
        %1409 = vmatprep.mubr.f32.mxu0 0.0
        %1410 = vmatmul.mubr.f32.gmra.mrb[0].mxu0 %v1341
        %v1411 = vpop.f32.mrb[0].mxu0
        %v1412 = vadd.f32 0.0, %v1411
        %v1413 = vpop.f32.mrb[0].mxu0
        %1414 = vdwg.mxu0
        %v1415 = vsel %vm808, %v880, -inf
        %1416 = vmax.xlane.f32.xlu0 %v1415
        %v1417 = vpop.xlane.xlu0 %1416
        %v1418 = vsel %vm808, %v956, -inf
        %1419 = vmax.xlane.f32.xlu0 %v1418
        %v1420 = vpop.xlane.xlu0 %1419
        %v1421 = vsel %vm808, %v1032, -inf
        %1422 = vmax.xlane.f32.xlu0 %v1421
        %v1423 = vpop.xlane.xlu0 %1422
        %v1424 = vsel %vm808, %v1108, -inf
        %1425 = vmax.xlane.f32.xlu0 %v1424
        %v1426 = vpop.xlane.xlu0 %1425
        %v1427 = vsel %vm808, %v1184, -inf
        %1428 = vmax.xlane.f32.xlu0 %v1427
        %v1429 = vpop.xlane.xlu0 %1428
        %v1430 = vsel %vm808, %v1260, -inf
        %1431 = vmax.xlane.f32.xlu0 %v1430
        %v1432 = vpop.xlane.xlu0 %1431
        %v1433 = vsel %vm808, %v1336, -inf
        %1434 = vmax.xlane.f32.xlu0 %v1433
        %v1435 = vpop.xlane.xlu0 %1434
        %v1436 = vsel %vm808, %v1412, -inf
        %1437 = vmax.xlane.f32.xlu0 %v1436
        %v1438 = vpop.xlane.xlu0 %1437
        %v1439 = vsub.f32 %v880, %v1417
        %v1440 = vsub.f32 %v956, %v1420
        %v1441 = vsub.f32 %v1032, %v1423
        %v1442 = vsub.f32 %v1108, %v1426
        %v1443 = vsub.f32 %v1184, %v1429
        %v1444 = vsub.f32 %v1260, %v1432
        %v1445 = vsub.f32 %v1336, %v1435
        %v1446 = vsub.f32 %v1412, %v1438
        %v1447 = vmul.f32 %v1439, 1.442695
        %v1448 = vpow.pop %v1447
        %v1449 = vmul.f32 %v1440, 1.442695
        %v1450 = vpow.pop %v1449
        %v1451 = vmul.f32 %v1441, 1.442695
        %v1452 = vpow.pop %v1451
        %v1453 = vmul.f32 %v1442, 1.442695
        %v1454 = vpow.pop %v1453
        %v1455 = vmul.f32 %v1443, 1.442695
        %v1456 = vpow.pop %v1455
        %v1457 = vmul.f32 %v1444, 1.442695
        %v1458 = vpow.pop %v1457
        %v1459 = vmul.f32 %v1445, 1.442695
        %v1460 = vpow.pop %v1459
        %v1461 = vmul.f32 %v1446, 1.442695
        %v1462 = vpow.pop %v1461
        %v1463 = vsel %vm808, %v1448, 0.0
        %1464 = vadd.xlane.f32.xlu0 %v1463
        %v1465 = vpop.xlane.xlu0 %1464
        %v1466 = vsel %vm808, %v1450, 0.0
        %1467 = vadd.xlane.f32.xlu0 %v1466
        %v1468 = vpop.xlane.xlu0 %1467
        %v1469 = vsel %vm808, %v1452, 0.0
        %1470 = vadd.xlane.f32.xlu0 %v1469
        %v1471 = vpop.xlane.xlu0 %1470
        %v1472 = vsel %vm808, %v1454, 0.0
        %1473 = vadd.xlane.f32.xlu0 %v1472
        %v1474 = vpop.xlane.xlu0 %1473
        %v1475 = vsel %vm808, %v1456, 0.0
        %1476 = vadd.xlane.f32.xlu0 %v1475
        %v1477 = vpop.xlane.xlu0 %1476
        %v1478 = vsel %vm808, %v1458, 0.0
        %1479 = vadd.xlane.f32.xlu0 %v1478
        %v1480 = vpop.xlane.xlu0 %1479
        %v1481 = vsel %vm808, %v1460, 0.0
        %1482 = vadd.xlane.f32.xlu0 %v1481
        %v1483 = vpop.xlane.xlu0 %1482
        %v1484 = vsel %vm808, %v1462, 0.0
        %1485 = vadd.xlane.f32.xlu0 %v1484
        %v1486 = vpop.xlane.xlu0 %1485
        %v1487 = vrcp.pop %v1465
        %v1488 = vmul.f32 %v1448, %v1487
        %v1489 = vrcp.pop %v1468
        %v1490 = vmul.f32 %v1450, %v1489
        %v1491 = vrcp.pop %v1471
        %v1492 = vmul.f32 %v1452, %v1491
        %v1493 = vrcp.pop %v1474
        %v1494 = vmul.f32 %v1454, %v1493
        %v1495 = vrcp.pop %v1477
        %v1496 = vmul.f32 %v1456, %v1495
        %v1497 = vrcp.pop %v1480
        %v1498 = vmul.f32 %v1458, %v1497
        %v1499 = vrcp.pop %v1483
        %v1500 = vmul.f32 %v1460, %v1499
        %v1501 = vrcp.pop %v1486
        %v1502 = vmul.f32 %v1462, %v1501
        %1503 = vrot.lane.b32.xlu0 %v784, 64
        %v1504 = vpop.permute.xlu0 %1503
        %v1507 = vsel %vm808, %v1488, 0
        %1509 = vmatprep.subr.mxu0 0.0
        %1510 = vmatpush1.msra.mxu0 %v1504
        %1511 = vmatprep.subr.mxu0 0.0
        %1512 = vmatpush1.msra.mxu0 0.0
        %1513 = vmatprep.subr.mxu0 0.0
        %1514 = vmatpush1.msra.mxu0 0.0
        %1515 = vmatprep.subr.mxu0 0.0
        %1516 = vmatpush1.msra.mxu0 0.0
        %1517 = vmatprep.subr.mxu0 0.0
        %1518 = vmatpush1.msra.mxu0 0.0
        %1519 = vmatprep.subr.mxu0 0.0
        %1520 = vmatpush1.msra.mxu0 0.0
        %1521 = vmatprep.subr.mxu0 0.0
        %1522 = vmatpush1.msra.mxu0 0.0
        %1523 = vmatprep.subr.mxu0 0.0
        %1524 = vmatpush1.msra.mxu0 0.0
        %1525 = vmatprep.subr.mxu0 0.0
        %1526 = vmatpush1.msra.mxu0 0.0
        %1527 = vmatprep.subr.mxu0 0.0
        %1528 = vmatpush1.msra.mxu0 0.0
        %1529 = vmatprep.subr.mxu0 0.0
        %1530 = vmatpush1.msra.mxu0 0.0
        %1531 = vmatprep.subr.mxu0 0.0
        %1532 = vmatpush1.msra.mxu0 0.0
        %1533 = vmatprep.subr.mxu0 0.0
        %1534 = vmatpush1.msra.mxu0 0.0
        %1535 = vmatprep.subr.mxu0 0.0
        %1536 = vmatpush1.msra.mxu0 0.0
        %1537 = vmatprep.subr.mxu0 0.0
        %1538 = vmatpush1.msra.mxu0 0.0
        %1539 = vmatprep.subr.mxu0 0.0
        %1540 = vmatpush1.msra.mxu0 0.0
        %1541 = vmatprep.subr.mxu0 0.0
        %1542 = vmatpush1.msra.mxu0 0.0
        %1543 = vmatprep.subr.mxu0 0.0
        %1544 = vmatpush1.msra.mxu0 0.0
        %1545 = vmatprep.subr.mxu0 0.0
        %1546 = vmatpush1.msra.mxu0 0.0
        %1547 = vmatprep.subr.mxu0 0.0
        %1548 = vmatpush1.msra.mxu0 0.0
        %1549 = vmatprep.subr.mxu0 0.0
        %1550 = vmatpush1.msra.mxu0 0.0
        %1551 = vmatprep.subr.mxu0 0.0
        %1552 = vmatpush1.msra.mxu0 0.0
        %1553 = vmatprep.subr.mxu0 0.0
        %1554 = vmatpush1.msra.mxu0 0.0
        %1555 = vmatprep.subr.mxu0 0.0
        %1556 = vmatpush1.msra.mxu0 0.0
        %1557 = vmatprep.subr.mxu0 0.0
        %1558 = vmatpush1.msra.mxu0 0.0
        %1559 = vmatprep.subr.mxu0 0.0
        %1560 = vmatpush1.msra.mxu0 0.0
        %1561 = vmatprep.subr.mxu0 0.0
        %1562 = vmatpush1.msra.mxu0 0.0
        %1563 = vmatprep.subr.mxu0 0.0
        %1564 = vmatpush1.msra.mxu0 0.0
        %1565 = vmatprep.subr.mxu0 0.0
        %1566 = vmatpush1.msra.mxu0 0.0
        %1567 = vmatprep.subr.mxu0 0.0
        %1568 = vmatpush1.msra.mxu0 0.0
        %1569 = vmatprep.subr.mxu0 0.0
        %1570 = vmatpush1.msra.mxu0 0.0
        %1571 = vmatprep.subr.mxu0 0.0
        %1572 = vmatpush1.msra.mxu0 0.0
        %1573 = vmatprep.mubr.f32.mxu0 0.0
        %1574 = vmatmul.mubr.f32.gmra.mrb[0].mxu0 %v1507
        %v1575 = vpop.f32.mrb[0].mxu0
        %v1576 = vadd.f32 0.0, %v1575
        %v1577 = vpop.f32.mrb[0].mxu0
        %1578 = vdwg.mxu0
        %1579 = vrot.lane.b32.xlu0 %v789, 64
        %v1580 = vpop.permute.xlu0 %1579
        %v1583 = vsel %vm808, %v1490, 0
        %1585 = vmatprep.subr.mxu0 0.0
        %1586 = vmatpush1.msra.mxu0 %v1580
        %1587 = vmatprep.subr.mxu0 0.0
        %1588 = vmatpush1.msra.mxu0 0.0
        %1589 = vmatprep.subr.mxu0 0.0
        %1590 = vmatpush1.msra.mxu0 0.0
        %1591 = vmatprep.subr.mxu0 0.0
        %1592 = vmatpush1.msra.mxu0 0.0
        %1593 = vmatprep.subr.mxu0 0.0
        %1594 = vmatpush1.msra.mxu0 0.0
        %1595 = vmatprep.subr.mxu0 0.0
        %1596 = vmatpush1.msra.mxu0 0.0
        %1597 = vmatprep.subr.mxu0 0.0
        %1598 = vmatpush1.msra.mxu0 0.0
        %1599 = vmatprep.subr.mxu0 0.0
        %1600 = vmatpush1.msra.mxu0 0.0
        %1601 = vmatprep.subr.mxu0 0.0
        %1602 = vmatpush1.msra.mxu0 0.0
        %1603 = vmatprep.subr.mxu0 0.0
        %1604 = vmatpush1.msra.mxu0 0.0
        %1605 = vmatprep.subr.mxu0 0.0
        %1606 = vmatpush1.msra.mxu0 0.0
        %1607 = vmatprep.subr.mxu0 0.0
        %1608 = vmatpush1.msra.mxu0 0.0
        %1609 = vmatprep.subr.mxu0 0.0
        %1610 = vmatpush1.msra.mxu0 0.0
        %1611 = vmatprep.subr.mxu0 0.0
        %1612 = vmatpush1.msra.mxu0 0.0
        %1613 = vmatprep.subr.mxu0 0.0
        %1614 = vmatpush1.msra.mxu0 0.0
        %1615 = vmatprep.subr.mxu0 0.0
        %1616 = vmatpush1.msra.mxu0 0.0
        %1617 = vmatprep.subr.mxu0 0.0
        %1618 = vmatpush1.msra.mxu0 0.0
        %1619 = vmatprep.subr.mxu0 0.0
        %1620 = vmatpush1.msra.mxu0 0.0
        %1621 = vmatprep.subr.mxu0 0.0
        %1622 = vmatpush1.msra.mxu0 0.0
        %1623 = vmatprep.subr.mxu0 0.0
        %1624 = vmatpush1.msra.mxu0 0.0
        %1625 = vmatprep.subr.mxu0 0.0
        %1626 = vmatpush1.msra.mxu0 0.0
        %1627 = vmatprep.subr.mxu0 0.0
        %1628 = vmatpush1.msra.mxu0 0.0
        %1629 = vmatprep.subr.mxu0 0.0
        %1630 = vmatpush1.msra.mxu0 0.0
        %1631 = vmatprep.subr.mxu0 0.0
        %1632 = vmatpush1.msra.mxu0 0.0
        %1633 = vmatprep.subr.mxu0 0.0
        %1634 = vmatpush1.msra.mxu0 0.0
        %1635 = vmatprep.subr.mxu0 0.0
        %1636 = vmatpush1.msra.mxu0 0.0
        %1637 = vmatprep.subr.mxu0 0.0
        %1638 = vmatpush1.msra.mxu0 0.0
        %1639 = vmatprep.subr.mxu0 0.0
        %1640 = vmatpush1.msra.mxu0 0.0
        %1641 = vmatprep.subr.mxu0 0.0
        %1642 = vmatpush1.msra.mxu0 0.0
        %1643 = vmatprep.subr.mxu0 0.0
        %1644 = vmatpush1.msra.mxu0 0.0
        %1645 = vmatprep.subr.mxu0 0.0
        %1646 = vmatpush1.msra.mxu0 0.0
        %1647 = vmatprep.subr.mxu0 0.0
        %1648 = vmatpush1.msra.mxu0 0.0
        %1649 = vmatprep.mubr.f32.mxu0 0.0
        %1650 = vmatmul.mubr.f32.gmra.mrb[0].mxu0 %v1583
        %v1651 = vpop.f32.mrb[0].mxu0
        %v1652 = vadd.f32 0.0, %v1651
        %v1653 = vpop.f32.mrb[0].mxu0
        %1654 = vdwg.mxu0
        %1655 = vrot.lane.b32.xlu0 %v795, 64
        %v1656 = vpop.permute.xlu0 %1655
        %v1659 = vsel %vm808, %v1492, 0
        %1661 = vmatprep.subr.mxu0 0.0
        %1662 = vmatpush1.msra.mxu0 %v1656
        %1663 = vmatprep.subr.mxu0 0.0
        %1664 = vmatpush1.msra.mxu0 0.0
        %1665 = vmatprep.subr.mxu0 0.0
        %1666 = vmatpush1.msra.mxu0 0.0
        %1667 = vmatprep.subr.mxu0 0.0
        %1668 = vmatpush1.msra.mxu0 0.0
        %1669 = vmatprep.subr.mxu0 0.0
        %1670 = vmatpush1.msra.mxu0 0.0
        %1671 = vmatprep.subr.mxu0 0.0
        %1672 = vmatpush1.msra.mxu0 0.0
        %1673 = vmatprep.subr.mxu0 0.0
        %1674 = vmatpush1.msra.mxu0 0.0
        %1675 = vmatprep.subr.mxu0 0.0
        %1676 = vmatpush1.msra.mxu0 0.0
        %1677 = vmatprep.subr.mxu0 0.0
        %1678 = vmatpush1.msra.mxu0 0.0
        %1679 = vmatprep.subr.mxu0 0.0
        %1680 = vmatpush1.msra.mxu0 0.0
        %1681 = vmatprep.subr.mxu0 0.0
        %1682 = vmatpush1.msra.mxu0 0.0
        %1683 = vmatprep.subr.mxu0 0.0
        %1684 = vmatpush1.msra.mxu0 0.0
        %1685 = vmatprep.subr.mxu0 0.0
        %1686 = vmatpush1.msra.mxu0 0.0
        %1687 = vmatprep.subr.mxu0 0.0
        %1688 = vmatpush1.msra.mxu0 0.0
        %1689 = vmatprep.subr.mxu0 0.0
        %1690 = vmatpush1.msra.mxu0 0.0
        %1691 = vmatprep.subr.mxu0 0.0
        %1692 = vmatpush1.msra.mxu0 0.0
        %1693 = vmatprep.subr.mxu0 0.0
        %1694 = vmatpush1.msra.mxu0 0.0
        %1695 = vmatprep.subr.mxu0 0.0
        %1696 = vmatpush1.msra.mxu0 0.0
        %1697 = vmatprep.subr.mxu0 0.0
        %1698 = vmatpush1.msra.mxu0 0.0
        %1699 = vmatprep.subr.mxu0 0.0
        %1700 = vmatpush1.msra.mxu0 0.0
        %1701 = vmatprep.subr.mxu0 0.0
        %1702 = vmatpush1.msra.mxu0 0.0
        %1703 = vmatprep.subr.mxu0 0.0
        %1704 = vmatpush1.msra.mxu0 0.0
        %1705 = vmatprep.subr.mxu0 0.0
        %1706 = vmatpush1.msra.mxu0 0.0
        %1707 = vmatprep.subr.mxu0 0.0
        %1708 = vmatpush1.msra.mxu0 0.0
        %1709 = vmatprep.subr.mxu0 0.0
        %1710 = vmatpush1.msra.mxu0 0.0
        %1711 = vmatprep.subr.mxu0 0.0
        %1712 = vmatpush1.msra.mxu0 0.0
        %1713 = vmatprep.subr.mxu0 0.0
        %1714 = vmatpush1.msra.mxu0 0.0
        %1715 = vmatprep.subr.mxu0 0.0
        %1716 = vmatpush1.msra.mxu0 0.0
        %1717 = vmatprep.subr.mxu0 0.0
        %1718 = vmatpush1.msra.mxu0 0.0
        %1719 = vmatprep.subr.mxu0 0.0
        %1720 = vmatpush1.msra.mxu0 0.0
        %1721 = vmatprep.subr.mxu0 0.0
        %1722 = vmatpush1.msra.mxu0 0.0
        %1723 = vmatprep.subr.mxu0 0.0
        %1724 = vmatpush1.msra.mxu0 0.0
        %1725 = vmatprep.mubr.f32.mxu0 0.0
        %1726 = vmatmul.mubr.f32.gmra.mrb[0].mxu0 %v1659
        %v1727 = vpop.f32.mrb[0].mxu0
        %v1728 = vadd.f32 0.0, %v1727
        %v1729 = vpop.f32.mrb[0].mxu0
        %1730 = vdwg.mxu0
        %1731 = vrot.lane.b32.xlu0 %v797, 64
        %v1732 = vpop.permute.xlu0 %1731
        %v1735 = vsel %vm808, %v1494, 0
        %1737 = vmatprep.subr.mxu0 0.0
        %1738 = vmatpush1.msra.mxu0 %v1732
        %1739 = vmatprep.subr.mxu0 0.0
        %1740 = vmatpush1.msra.mxu0 0.0
        %1741 = vmatprep.subr.mxu0 0.0
        %1742 = vmatpush1.msra.mxu0 0.0
        %1743 = vmatprep.subr.mxu0 0.0
        %1744 = vmatpush1.msra.mxu0 0.0
        %1745 = vmatprep.subr.mxu0 0.0
        %1746 = vmatpush1.msra.mxu0 0.0
        %1747 = vmatprep.subr.mxu0 0.0
        %1748 = vmatpush1.msra.mxu0 0.0
        %1749 = vmatprep.subr.mxu0 0.0
        %1750 = vmatpush1.msra.mxu0 0.0
        %1751 = vmatprep.subr.mxu0 0.0
        %1752 = vmatpush1.msra.mxu0 0.0
        %1753 = vmatprep.subr.mxu0 0.0
        %1754 = vmatpush1.msra.mxu0 0.0
        %1755 = vmatprep.subr.mxu0 0.0
        %1756 = vmatpush1.msra.mxu0 0.0
        %1757 = vmatprep.subr.mxu0 0.0
        %1758 = vmatpush1.msra.mxu0 0.0
        %1759 = vmatprep.subr.mxu0 0.0
        %1760 = vmatpush1.msra.mxu0 0.0
        %1761 = vmatprep.subr.mxu0 0.0
        %1762 = vmatpush1.msra.mxu0 0.0
        %1763 = vmatprep.subr.mxu0 0.0
        %1764 = vmatpush1.msra.mxu0 0.0
        %1765 = vmatprep.subr.mxu0 0.0
        %1766 = vmatpush1.msra.mxu0 0.0
        %1767 = vmatprep.subr.mxu0 0.0
        %1768 = vmatpush1.msra.mxu0 0.0
        %1769 = vmatprep.subr.mxu0 0.0
        %1770 = vmatpush1.msra.mxu0 0.0
        %1771 = vmatprep.subr.mxu0 0.0
        %1772 = vmatpush1.msra.mxu0 0.0
        %1773 = vmatprep.subr.mxu0 0.0
        %1774 = vmatpush1.msra.mxu0 0.0
        %1775 = vmatprep.subr.mxu0 0.0
        %1776 = vmatpush1.msra.mxu0 0.0
        %1777 = vmatprep.subr.mxu0 0.0
        %1778 = vmatpush1.msra.mxu0 0.0
        %1779 = vmatprep.subr.mxu0 0.0
        %1780 = vmatpush1.msra.mxu0 0.0
        %1781 = vmatprep.subr.mxu0 0.0
        %1782 = vmatpush1.msra.mxu0 0.0
        %1783 = vmatprep.subr.mxu0 0.0
        %1784 = vmatpush1.msra.mxu0 0.0
        %1785 = vmatprep.subr.mxu0 0.0
        %1786 = vmatpush1.msra.mxu0 0.0
        %1787 = vmatprep.subr.mxu0 0.0
        %1788 = vmatpush1.msra.mxu0 0.0
        %1789 = vmatprep.subr.mxu0 0.0
        %1790 = vmatpush1.msra.mxu0 0.0
        %1791 = vmatprep.subr.mxu0 0.0
        %1792 = vmatpush1.msra.mxu0 0.0
        %1793 = vmatprep.subr.mxu0 0.0
        %1794 = vmatpush1.msra.mxu0 0.0
        %1795 = vmatprep.subr.mxu0 0.0
        %1796 = vmatpush1.msra.mxu0 0.0
        %1797 = vmatprep.subr.mxu0 0.0
        %1798 = vmatpush1.msra.mxu0 0.0
        %1799 = vmatprep.subr.mxu0 0.0
        %1800 = vmatpush1.msra.mxu0 0.0
        %1801 = vmatprep.mubr.f32.mxu0 0.0
        %1802 = vmatmul.mubr.f32.gmra.mrb[0].mxu0 %v1735
        %v1803 = vpop.f32.mrb[0].mxu0
        %v1804 = vadd.f32 0.0, %v1803
        %v1805 = vpop.f32.mrb[0].mxu0
        %1806 = vdwg.mxu0
        %1807 = vrot.lane.b32.xlu0 %v799, 64
        %v1808 = vpop.permute.xlu0 %1807
        %v1811 = vsel %vm808, %v1496, 0
        %1813 = vmatprep.subr.mxu0 0.0
        %1814 = vmatpush1.msra.mxu0 %v1808
        %1815 = vmatprep.subr.mxu0 0.0
        %1816 = vmatpush1.msra.mxu0 0.0
        %1817 = vmatprep.subr.mxu0 0.0
        %1818 = vmatpush1.msra.mxu0 0.0
        %1819 = vmatprep.subr.mxu0 0.0
        %1820 = vmatpush1.msra.mxu0 0.0
        %1821 = vmatprep.subr.mxu0 0.0
        %1822 = vmatpush1.msra.mxu0 0.0
        %1823 = vmatprep.subr.mxu0 0.0
        %1824 = vmatpush1.msra.mxu0 0.0
        %1825 = vmatprep.subr.mxu0 0.0
        %1826 = vmatpush1.msra.mxu0 0.0
        %1827 = vmatprep.subr.mxu0 0.0
        %1828 = vmatpush1.msra.mxu0 0.0
        %1829 = vmatprep.subr.mxu0 0.0
        %1830 = vmatpush1.msra.mxu0 0.0
        %1831 = vmatprep.subr.mxu0 0.0
        %1832 = vmatpush1.msra.mxu0 0.0
        %1833 = vmatprep.subr.mxu0 0.0
        %1834 = vmatpush1.msra.mxu0 0.0
        %1835 = vmatprep.subr.mxu0 0.0
        %1836 = vmatpush1.msra.mxu0 0.0
        %1837 = vmatprep.subr.mxu0 0.0
        %1838 = vmatpush1.msra.mxu0 0.0
        %1839 = vmatprep.subr.mxu0 0.0
        %1840 = vmatpush1.msra.mxu0 0.0
        %1841 = vmatprep.subr.mxu0 0.0
        %1842 = vmatpush1.msra.mxu0 0.0
        %1843 = vmatprep.subr.mxu0 0.0
        %1844 = vmatpush1.msra.mxu0 0.0
        %1845 = vmatprep.subr.mxu0 0.0
        %1846 = vmatpush1.msra.mxu0 0.0
        %1847 = vmatprep.subr.mxu0 0.0
        %1848 = vmatpush1.msra.mxu0 0.0
        %1849 = vmatprep.subr.mxu0 0.0
        %1850 = vmatpush1.msra.mxu0 0.0
        %1851 = vmatprep.subr.mxu0 0.0
        %1852 = vmatpush1.msra.mxu0 0.0
        %1853 = vmatprep.subr.mxu0 0.0
        %1854 = vmatpush1.msra.mxu0 0.0
        %1855 = vmatprep.subr.mxu0 0.0
        %1856 = vmatpush1.msra.mxu0 0.0
        %1857 = vmatprep.subr.mxu0 0.0
        %1858 = vmatpush1.msra.mxu0 0.0
        %1859 = vmatprep.subr.mxu0 0.0
        %1860 = vmatpush1.msra.mxu0 0.0
        %1861 = vmatprep.subr.mxu0 0.0
        %1862 = vmatpush1.msra.mxu0 0.0
        %1863 = vmatprep.subr.mxu0 0.0
        %1864 = vmatpush1.msra.mxu0 0.0
        %1865 = vmatprep.subr.mxu0 0.0
        %1866 = vmatpush1.msra.mxu0 0.0
        %1867 = vmatprep.subr.mxu0 0.0
        %1868 = vmatpush1.msra.mxu0 0.0
        %1869 = vmatprep.subr.mxu0 0.0
        %1870 = vmatpush1.msra.mxu0 0.0
        %1871 = vmatprep.subr.mxu0 0.0
        %1872 = vmatpush1.msra.mxu0 0.0
        %1873 = vmatprep.subr.mxu0 0.0
        %1874 = vmatpush1.msra.mxu0 0.0
        %1875 = vmatprep.subr.mxu0 0.0
        %1876 = vmatpush1.msra.mxu0 0.0
        %1877 = vmatprep.mubr.f32.mxu0 0.0
        %1878 = vmatmul.mubr.f32.gmra.mrb[0].mxu0 %v1811
        %v1879 = vpop.f32.mrb[0].mxu0
        %v1880 = vadd.f32 0.0, %v1879
        %v1881 = vpop.f32.mrb[0].mxu0
        %1882 = vdwg.mxu0
        %1883 = vrot.lane.b32.xlu0 %v801, 64
        %v1884 = vpop.permute.xlu0 %1883
        %v1887 = vsel %vm808, %v1498, 0
        %1889 = vmatprep.subr.mxu0 0.0
        %1890 = vmatpush1.msra.mxu0 %v1884
        %1891 = vmatprep.subr.mxu0 0.0
        %1892 = vmatpush1.msra.mxu0 0.0
        %1893 = vmatprep.subr.mxu0 0.0
        %1894 = vmatpush1.msra.mxu0 0.0
        %1895 = vmatprep.subr.mxu0 0.0
        %1896 = vmatpush1.msra.mxu0 0.0
        %1897 = vmatprep.subr.mxu0 0.0
        %1898 = vmatpush1.msra.mxu0 0.0
        %1899 = vmatprep.subr.mxu0 0.0
        %1900 = vmatpush1.msra.mxu0 0.0
        %1901 = vmatprep.subr.mxu0 0.0
        %1902 = vmatpush1.msra.mxu0 0.0
        %1903 = vmatprep.subr.mxu0 0.0
        %1904 = vmatpush1.msra.mxu0 0.0
        %1905 = vmatprep.subr.mxu0 0.0
        %1906 = vmatpush1.msra.mxu0 0.0
        %1907 = vmatprep.subr.mxu0 0.0
        %1908 = vmatpush1.msra.mxu0 0.0
        %1909 = vmatprep.subr.mxu0 0.0
        %1910 = vmatpush1.msra.mxu0 0.0
        %1911 = vmatprep.subr.mxu0 0.0
        %1912 = vmatpush1.msra.mxu0 0.0
        %1913 = vmatprep.subr.mxu0 0.0
        %1914 = vmatpush1.msra.mxu0 0.0
        %1915 = vmatprep.subr.mxu0 0.0
        %1916 = vmatpush1.msra.mxu0 0.0
        %1917 = vmatprep.subr.mxu0 0.0
        %1918 = vmatpush1.msra.mxu0 0.0
        %1919 = vmatprep.subr.mxu0 0.0
        %1920 = vmatpush1.msra.mxu0 0.0
        %1921 = vmatprep.subr.mxu0 0.0
        %1922 = vmatpush1.msra.mxu0 0.0
        %1923 = vmatprep.subr.mxu0 0.0
        %1924 = vmatpush1.msra.mxu0 0.0
        %1925 = vmatprep.subr.mxu0 0.0
        %1926 = vmatpush1.msra.mxu0 0.0
        %1927 = vmatprep.subr.mxu0 0.0
        %1928 = vmatpush1.msra.mxu0 0.0
        %1929 = vmatprep.subr.mxu0 0.0
        %1930 = vmatpush1.msra.mxu0 0.0
        %1931 = vmatprep.subr.mxu0 0.0
        %1932 = vmatpush1.msra.mxu0 0.0
        %1933 = vmatprep.subr.mxu0 0.0
        %1934 = vmatpush1.msra.mxu0 0.0
        %1935 = vmatprep.subr.mxu0 0.0
        %1936 = vmatpush1.msra.mxu0 0.0
        %1937 = vmatprep.subr.mxu0 0.0
        %1938 = vmatpush1.msra.mxu0 0.0
        %1939 = vmatprep.subr.mxu0 0.0
        %1940 = vmatpush1.msra.mxu0 0.0
        %1941 = vmatprep.subr.mxu0 0.0
        %1942 = vmatpush1.msra.mxu0 0.0
        %1943 = vmatprep.subr.mxu0 0.0
        %1944 = vmatpush1.msra.mxu0 0.0
        %1945 = vmatprep.subr.mxu0 0.0
        %1946 = vmatpush1.msra.mxu0 0.0
        %1947 = vmatprep.subr.mxu0 0.0
        %1948 = vmatpush1.msra.mxu0 0.0
        %1949 = vmatprep.subr.mxu0 0.0
        %1950 = vmatpush1.msra.mxu0 0.0
        %1951 = vmatprep.subr.mxu0 0.0
        %1952 = vmatpush1.msra.mxu0 0.0
        %1953 = vmatprep.mubr.f32.mxu0 0.0
        %1954 = vmatmul.mubr.f32.gmra.mrb[0].mxu0 %v1887
        %v1955 = vpop.f32.mrb[0].mxu0
        %v1956 = vadd.f32 0.0, %v1955
        %v1957 = vpop.f32.mrb[0].mxu0
        %1958 = vdwg.mxu0
        %1959 = vrot.lane.b32.xlu0 %v803, 64
        %v1960 = vpop.permute.xlu0 %1959
        %v1963 = vsel %vm808, %v1500, 0
        %1965 = vmatprep.subr.mxu0 0.0
        %1966 = vmatpush1.msra.mxu0 %v1960
        %1967 = vmatprep.subr.mxu0 0.0
        %1968 = vmatpush1.msra.mxu0 0.0
        %1969 = vmatprep.subr.mxu0 0.0
        %1970 = vmatpush1.msra.mxu0 0.0
        %1971 = vmatprep.subr.mxu0 0.0
        %1972 = vmatpush1.msra.mxu0 0.0
        %1973 = vmatprep.subr.mxu0 0.0
        %1974 = vmatpush1.msra.mxu0 0.0
        %1975 = vmatprep.subr.mxu0 0.0
        %1976 = vmatpush1.msra.mxu0 0.0
        %1977 = vmatprep.subr.mxu0 0.0
        %1978 = vmatpush1.msra.mxu0 0.0
        %1979 = vmatprep.subr.mxu0 0.0
        %1980 = vmatpush1.msra.mxu0 0.0
        %1981 = vmatprep.subr.mxu0 0.0
        %1982 = vmatpush1.msra.mxu0 0.0
        %1983 = vmatprep.subr.mxu0 0.0
        %1984 = vmatpush1.msra.mxu0 0.0
        %1985 = vmatprep.subr.mxu0 0.0
        %1986 = vmatpush1.msra.mxu0 0.0
        %1987 = vmatprep.subr.mxu0 0.0
        %1988 = vmatpush1.msra.mxu0 0.0
        %1989 = vmatprep.subr.mxu0 0.0
        %1990 = vmatpush1.msra.mxu0 0.0
        %1991 = vmatprep.subr.mxu0 0.0
        %1992 = vmatpush1.msra.mxu0 0.0
        %1993 = vmatprep.subr.mxu0 0.0
        %1994 = vmatpush1.msra.mxu0 0.0
        %1995 = vmatprep.subr.mxu0 0.0
        %1996 = vmatpush1.msra.mxu0 0.0
        %1997 = vmatprep.subr.mxu0 0.0
        %1998 = vmatpush1.msra.mxu0 0.0
        %1999 = vmatprep.subr.mxu0 0.0
        %2000 = vmatpush1.msra.mxu0 0.0
        %2001 = vmatprep.subr.mxu0 0.0
        %2002 = vmatpush1.msra.mxu0 0.0
        %2003 = vmatprep.subr.mxu0 0.0
        %2004 = vmatpush1.msra.mxu0 0.0
        %2005 = vmatprep.subr.mxu0 0.0
        %2006 = vmatpush1.msra.mxu0 0.0
        %2007 = vmatprep.subr.mxu0 0.0
        %2008 = vmatpush1.msra.mxu0 0.0
        %2009 = vmatprep.subr.mxu0 0.0
        %2010 = vmatpush1.msra.mxu0 0.0
        %2011 = vmatprep.subr.mxu0 0.0
        %2012 = vmatpush1.msra.mxu0 0.0
        %2013 = vmatprep.subr.mxu0 0.0
        %2014 = vmatpush1.msra.mxu0 0.0
        %2015 = vmatprep.subr.mxu0 0.0
        %2016 = vmatpush1.msra.mxu0 0.0
        %2017 = vmatprep.subr.mxu0 0.0
        %2018 = vmatpush1.msra.mxu0 0.0
        %2019 = vmatprep.subr.mxu0 0.0
        %2020 = vmatpush1.msra.mxu0 0.0
        %2021 = vmatprep.subr.mxu0 0.0
        %2022 = vmatpush1.msra.mxu0 0.0
        %2023 = vmatprep.subr.mxu0 0.0
        %2024 = vmatpush1.msra.mxu0 0.0
        %2025 = vmatprep.subr.mxu0 0.0
        %2026 = vmatpush1.msra.mxu0 0.0
        %2027 = vmatprep.subr.mxu0 0.0
        %2028 = vmatpush1.msra.mxu0 0.0
        %2029 = vmatprep.mubr.f32.mxu0 0.0
        %2030 = vmatmul.mubr.f32.gmra.mrb[0].mxu0 %v1963
        %v2031 = vpop.f32.mrb[0].mxu0
        %v2032 = vadd.f32 0.0, %v2031
        %v2033 = vpop.f32.mrb[0].mxu0
        %2034 = vdwg.mxu0
        %2035 = vrot.lane.b32.xlu0 %v805, 64
        %v2036 = vpop.permute.xlu0 %2035
        %v2039 = vsel %vm808, %v1502, 0
        %2041 = vmatprep.subr.mxu0 0.0
        %2042 = vmatpush1.msra.mxu0 %v2036
        %2043 = vmatprep.subr.mxu0 0.0
        %2044 = vmatpush1.msra.mxu0 0.0
        %2045 = vmatprep.subr.mxu0 0.0
        %2046 = vmatpush1.msra.mxu0 0.0
        %2047 = vmatprep.subr.mxu0 0.0
        %2048 = vmatpush1.msra.mxu0 0.0
        %2049 = vmatprep.subr.mxu0 0.0
        %2050 = vmatpush1.msra.mxu0 0.0
        %2051 = vmatprep.subr.mxu0 0.0
        %2052 = vmatpush1.msra.mxu0 0.0
        %2053 = vmatprep.subr.mxu0 0.0
        %2054 = vmatpush1.msra.mxu0 0.0
        %2055 = vmatprep.subr.mxu0 0.0
        %2056 = vmatpush1.msra.mxu0 0.0
        %2057 = vmatprep.subr.mxu0 0.0
        %2058 = vmatpush1.msra.mxu0 0.0
        %2059 = vmatprep.subr.mxu0 0.0
        %2060 = vmatpush1.msra.mxu0 0.0
        %2061 = vmatprep.subr.mxu0 0.0
        %2062 = vmatpush1.msra.mxu0 0.0
        %2063 = vmatprep.subr.mxu0 0.0
        %2064 = vmatpush1.msra.mxu0 0.0
        %2065 = vmatprep.subr.mxu0 0.0
        %2066 = vmatpush1.msra.mxu0 0.0
        %2067 = vmatprep.subr.mxu0 0.0
        %2068 = vmatpush1.msra.mxu0 0.0
        %2069 = vmatprep.subr.mxu0 0.0
        %2070 = vmatpush1.msra.mxu0 0.0
        %2071 = vmatprep.subr.mxu0 0.0
        %2072 = vmatpush1.msra.mxu0 0.0
        %2073 = vmatprep.subr.mxu0 0.0
        %2074 = vmatpush1.msra.mxu0 0.0
        %2075 = vmatprep.subr.mxu0 0.0
        %2076 = vmatpush1.msra.mxu0 0.0
        %2077 = vmatprep.subr.mxu0 0.0
        %2078 = vmatpush1.msra.mxu0 0.0
        %2079 = vmatprep.subr.mxu0 0.0
        %2080 = vmatpush1.msra.mxu0 0.0
        %2081 = vmatprep.subr.mxu0 0.0
        %2082 = vmatpush1.msra.mxu0 0.0
        %2083 = vmatprep.subr.mxu0 0.0
        %2084 = vmatpush1.msra.mxu0 0.0
        %2085 = vmatprep.subr.mxu0 0.0
        %2086 = vmatpush1.msra.mxu0 0.0
        %2087 = vmatprep.subr.mxu0 0.0
        %2088 = vmatpush1.msra.mxu0 0.0
        %2089 = vmatprep.subr.mxu0 0.0
        %2090 = vmatpush1.msra.mxu0 0.0
        %2091 = vmatprep.subr.mxu0 0.0
        %2092 = vmatpush1.msra.mxu0 0.0
        %2093 = vmatprep.subr.mxu0 0.0
        %2094 = vmatpush1.msra.mxu0 0.0
        %2095 = vmatprep.subr.mxu0 0.0
        %2096 = vmatpush1.msra.mxu0 0.0
        %2097 = vmatprep.subr.mxu0 0.0
        %2098 = vmatpush1.msra.mxu0 0.0
        %2099 = vmatprep.subr.mxu0 0.0
        %2100 = vmatpush1.msra.mxu0 0.0
        %2101 = vmatprep.subr.mxu0 0.0
        %2102 = vmatpush1.msra.mxu0 0.0
        %2103 = vmatprep.subr.mxu0 0.0
        %2104 = vmatpush1.msra.mxu0 0.0
        %2105 = vmatprep.mubr.f32.mxu0 0.0
        %2106 = vmatmul.mubr.f32.gmra.mrb[0].mxu0 %v2039
        %v2107 = vpop.f32.mrb[0].mxu0
        %v2108 = vadd.f32 0.0, %v2107
        %v2109 = vpop.f32.mrb[0].mxu0
        %2110 = vdwg.mxu0
        %2113 = vrot.lane.b32.xlu0 %v1728, 8
        %v2114 = vpop.permute.xlu0 %2113
        %2115 = vrot.lane.b32.xlu0 %v1804, 8
        %v2116 = vpop.permute.xlu0 %2115
        %2121 = vrot.lane.b32.xlu0 %v1880, 16
        %v2122 = vpop.permute.xlu0 %2121
        %2123 = vrot.lane.b32.xlu0 %v1956, 16
        %v2124 = vpop.permute.xlu0 %2123
        %2129 = vrot.lane.b32.xlu0 %v2032, 24
        %v2130 = vpop.permute.xlu0 %2129
        %2131 = vrot.lane.b32.xlu0 %v2108, 24
        %v2132 = vpop.permute.xlu0 %2131
        %v2135 = vsel %vm808, %v1576, %v2114
        %v2136 = vsel %vm808, %v1652, %v2116
        %vm2137 = vcmask 130048
        %v2138 = vsel %vm2137, %v2135, %v2122
        %v2139 = vsel %vm2137, %v2136, %v2124
        %vm2140 = vcmask 195584
        %v2141 = vsel %vm2140, %v2138, %v2130
        %v2142 = vsel %vm2140, %v2139, %v2132
        %v2143 = vld [vmem:[%s612] sm:$0xff]
        %v2144 = vld [vmem:[%s612 + $0x8] sm:$0xff]
        %v2145 = vld [vmem:[%s612 + $0x10] sm:$0xff]
        %v2146 = vld [vmem:[%s612 + $0x18] sm:$0xff]
        %v2148 = vlaneseq
        %v2149 = vshrl.u32 %v2148, 7
        %v2150 = vsub.s32 0, %v2149
        %v2151 = vrot.slane %v655, %v2150
        %v2154 = vsel %vm657, %v2141, 0
        %v2157 = vsel %vm657, %v2142, 0
        %2159 = vmatprep.subr.mxu0 0.0
        %2160 = vmatpush1.msra.mxu0 %v2143
        %2161 = vmatprep.subr.mxu0 0.0
        %2162 = vmatpush1.msra.mxu0 %v2144
        %2163 = vmatprep.subr.mxu0 0.0
        %2164 = vmatpush1.msra.mxu0 %v2145
        %2165 = vmatprep.subr.mxu0 0.0
        %2166 = vmatpush1.msra.mxu0 %v2146
        %2167 = vmatprep.subr.mxu0 0.0
        %2168 = vmatpush1.msra.mxu0 0.0
        %2169 = vmatprep.subr.mxu0 0.0
        %2170 = vmatpush1.msra.mxu0 0.0
        %2171 = vmatprep.subr.mxu0 0.0
        %2172 = vmatpush1.msra.mxu0 0.0
        %2173 = vmatprep.subr.mxu0 0.0
        %2174 = vmatpush1.msra.mxu0 0.0
        %2175 = vmatprep.subr.mxu0 0.0
        %2176 = vmatpush1.msra.mxu0 0.0
        %2177 = vmatprep.subr.mxu0 0.0
        %2178 = vmatpush1.msra.mxu0 0.0
        %2179 = vmatprep.subr.mxu0 0.0
        %2180 = vmatpush1.msra.mxu0 0.0
        %2181 = vmatprep.subr.mxu0 0.0
        %2182 = vmatpush1.msra.mxu0 0.0
        %2183 = vmatprep.subr.mxu0 0.0
        %2184 = vmatpush1.msra.mxu0 0.0
        %2185 = vmatprep.subr.mxu0 0.0
        %2186 = vmatpush1.msra.mxu0 0.0
        %2187 = vmatprep.subr.mxu0 0.0
        %2188 = vmatpush1.msra.mxu0 0.0
        %2189 = vmatprep.subr.mxu0 0.0
        %2190 = vmatpush1.msra.mxu0 0.0
        %2191 = vmatprep.subr.mxu0 0.0
        %2192 = vmatpush1.msra.mxu0 0.0
        %2193 = vmatprep.subr.mxu0 0.0
        %2194 = vmatpush1.msra.mxu0 0.0
        %2195 = vmatprep.subr.mxu0 0.0
        %2196 = vmatpush1.msra.mxu0 0.0
        %2197 = vmatprep.subr.mxu0 0.0
        %2198 = vmatpush1.msra.mxu0 0.0
        %2199 = vmatprep.subr.mxu0 0.0
        %2200 = vmatpush1.msra.mxu0 0.0
        %2201 = vmatprep.subr.mxu0 0.0
        %2202 = vmatpush1.msra.mxu0 0.0
        %2203 = vmatprep.subr.mxu0 0.0
        %2204 = vmatpush1.msra.mxu0 0.0
        %2205 = vmatprep.subr.mxu0 0.0
        %2206 = vmatpush1.msra.mxu0 0.0
        %2207 = vmatprep.subr.mxu0 0.0
        %2208 = vmatpush1.msra.mxu0 0.0
        %2209 = vmatprep.subr.mxu0 0.0
        %2210 = vmatpush1.msra.mxu0 0.0
        %2211 = vmatprep.subr.mxu0 0.0
        %2212 = vmatpush1.msra.mxu0 0.0
        %2213 = vmatprep.subr.mxu0 0.0
        %2214 = vmatpush1.msra.mxu0 0.0
        %2215 = vmatprep.subr.mxu0 0.0
        %2216 = vmatpush1.msra.mxu0 0.0
        %2217 = vmatprep.subr.mxu0 0.0
        %2218 = vmatpush1.msra.mxu0 0.0
        %2219 = vmatprep.subr.mxu0 0.0
        %2220 = vmatpush1.msra.mxu0 0.0
        %2221 = vmatprep.subr.mxu0 0.0
        %2222 = vmatpush1.msra.mxu0 0.0
        %2223 = vmatprep.mubr.f32.mxu0 0.0
        %2224 = vmatmul.mubr.f32.gmra.mrb[0].mxu0 %v2154
        %v2225 = vpop.f32.mrb[0].mxu0
        %v2226 = vadd.f32 %v2151, %v2225
        %v2227 = vpop.f32.mrb[0].mxu0
        %2228 = vmatprep.mubr.f32.mxu0 0.0
        %2229 = vmatmul.mubr.f32.gmra.mrb[0].mxu0 %v2157
        %v2230 = vpop.f32.mrb[0].mxu0
        %v2231 = vadd.f32 %v2151, %v2230
        %v2232 = vpop.f32.mrb[0].mxu0
        %2233 = vdwg.mxu0
        %v2234 = vadd.f32 %v648, %v2226
        %v2235 = vadd.f32 %v649, %v2231
        %v2236 = vsel %vm657, %v2234, 0.0
        %2237 = vadd.xlane.f32.xlu0 %v2236
        %v2238 = vpop.xlane.xlu0 %2237
        %v2239 = vsel %vm657, %v2235, 0.0
        %2240 = vadd.xlane.f32.xlu0 %v2239
        %v2241 = vpop.xlane.xlu0 %2240
        %v2242 = vmul.f32 %v2238, %v664
        %v2243 = vmul.f32 %v2241, %v664
        %v2244 = vsub.f32 %v2234, %v2242
        %v2245 = vsub.f32 %v2235, %v2243
        %v2246 = vmul.f32 %v2244, %v2244
        %v2247 = vmul.f32 %v2245, %v2245
        %v2248 = vsel %vm657, %v2246, 0.0
        %2249 = vadd.xlane.f32.xlu0 %v2248
        %v2250 = vpop.xlane.xlu0 %2249
        %v2251 = vsel %vm657, %v2247, 0.0
        %2252 = vadd.xlane.f32.xlu0 %v2251
        %v2253 = vpop.xlane.xlu0 %2252
        %v2254 = vmul.f32 %v2250, %v664
        %v2255 = vmul.f32 %v2253, %v664
        %v2256 = vadd.f32 %v2254, 1e-05
        %v2257 = vadd.f32 %v2255, 1e-05
        %v2258 = vrsqrt.pop %v2256
        %v2259 = vrsqrt.pop %v2257
        %v2260 = vmul.f32 %v2244, %v2258
        %v2261 = vmul.f32 %v2245, %v2259
        %v2263 = vlaneseq
        %v2264 = vshrl.u32 %v2263, 7
        %v2265 = vsub.s32 0, %v2264
        %v2266 = vrot.slane %v652, %v2265
        %v2268 = vmul.f32 %v2260, %v2266
        %v2269 = vmul.f32 %v2261, %v2266
        %v2271 = vlaneseq
        %v2272 = vshrl.u32 %v2271, 7
        %v2273 = vsub.s32 0, %v2272
        %v2274 = vrot.slane %v653, %v2273
        %v2276 = vadd.f32 %v2268, %v2274
        %v2277 = vadd.f32 %v2269, %v2274
        %v2278 = vld [vmem:[%s626] sm:$0xff]
        %v2279 = vld [vmem:[%s626 + $0x8] sm:$0xff]
        %v2280 = vld [vmem:[%s626 + $0x10] sm:$0xff]
        %v2281 = vld [vmem:[%s626 + $0x18] sm:$0xff]
        %v2282 = vld [vmem:[%s629] sm:$0x1]
        %v2284 = vlaneseq
        %v2285 = vshrl.u32 %v2284, 7
        %v2286 = vsub.s32 0, %v2285
        %v2287 = vrot.slane %v2282, %v2286
        %v2290 = vsel %vm657, %v2276, 0
        %v2293 = vsel %vm657, %v2277, 0
        %2295 = vmatprep.subr.mxu0 0.0
        %2296 = vmatpush1.msra.mxu0 %v2278
        %2297 = vmatprep.subr.mxu0 0.0
        %2298 = vmatpush1.msra.mxu0 %v2279
        %2299 = vmatprep.subr.mxu0 0.0
        %2300 = vmatpush1.msra.mxu0 %v2280
        %2301 = vmatprep.subr.mxu0 0.0
        %2302 = vmatpush1.msra.mxu0 %v2281
        %2303 = vmatprep.subr.mxu0 0.0
        %2304 = vmatpush1.msra.mxu0 0.0
        %2305 = vmatprep.subr.mxu0 0.0
        %2306 = vmatpush1.msra.mxu0 0.0
        %2307 = vmatprep.subr.mxu0 0.0
        %2308 = vmatpush1.msra.mxu0 0.0
        %2309 = vmatprep.subr.mxu0 0.0
        %2310 = vmatpush1.msra.mxu0 0.0
        %2311 = vmatprep.subr.mxu0 0.0
        %2312 = vmatpush1.msra.mxu0 0.0
        %2313 = vmatprep.subr.mxu0 0.0
        %2314 = vmatpush1.msra.mxu0 0.0
        %2315 = vmatprep.subr.mxu0 0.0
        %2316 = vmatpush1.msra.mxu0 0.0
        %2317 = vmatprep.subr.mxu0 0.0
        %2318 = vmatpush1.msra.mxu0 0.0
        %2319 = vmatprep.subr.mxu0 0.0
        %2320 = vmatpush1.msra.mxu0 0.0
        %2321 = vmatprep.subr.mxu0 0.0
        %2322 = vmatpush1.msra.mxu0 0.0
        %2323 = vmatprep.subr.mxu0 0.0
        %2324 = vmatpush1.msra.mxu0 0.0
        %2325 = vmatprep.subr.mxu0 0.0
        %2326 = vmatpush1.msra.mxu0 0.0
        %2327 = vmatprep.subr.mxu0 0.0
        %2328 = vmatpush1.msra.mxu0 0.0
        %2329 = vmatprep.subr.mxu0 0.0
        %2330 = vmatpush1.msra.mxu0 0.0
        %2331 = vmatprep.subr.mxu0 0.0
        %2332 = vmatpush1.msra.mxu0 0.0
        %2333 = vmatprep.subr.mxu0 0.0
        %2334 = vmatpush1.msra.mxu0 0.0
        %2335 = vmatprep.subr.mxu0 0.0
        %2336 = vmatpush1.msra.mxu0 0.0
        %2337 = vmatprep.subr.mxu0 0.0
        %2338 = vmatpush1.msra.mxu0 0.0
        %2339 = vmatprep.subr.mxu0 0.0
        %2340 = vmatpush1.msra.mxu0 0.0
        %2341 = vmatprep.subr.mxu0 0.0
        %2342 = vmatpush1.msra.mxu0 0.0
        %2343 = vmatprep.subr.mxu0 0.0
        %2344 = vmatpush1.msra.mxu0 0.0
        %2345 = vmatprep.subr.mxu0 0.0
        %2346 = vmatpush1.msra.mxu0 0.0
        %2347 = vmatprep.subr.mxu0 0.0
        %2348 = vmatpush1.msra.mxu0 0.0
        %2349 = vmatprep.subr.mxu0 0.0
        %2350 = vmatpush1.msra.mxu0 0.0
        %2351 = vmatprep.subr.mxu0 0.0
        %2352 = vmatpush1.msra.mxu0 0.0
        %2353 = vmatprep.subr.mxu0 0.0
        %2354 = vmatpush1.msra.mxu0 0.0
        %2355 = vmatprep.subr.mxu0 0.0
        %2356 = vmatpush1.msra.mxu0 0.0
        %2357 = vmatprep.subr.mxu0 0.0
        %2358 = vmatpush1.msra.mxu0 0.0
        %2359 = vmatprep.mubr.f32.mxu0 0.0
        %2360 = vmatmul.mubr.f32.gmra.mrb[0].mxu0 %v2290
        %v2361 = vpop.f32.mrb[0].mxu0
        %v2362 = vadd.f32 %v2287, %v2361
        %v2363 = vpop.f32.mrb[0].mxu0
        %2364 = vmatprep.mubr.f32.mxu0 0.0
        %2365 = vmatmul.mubr.f32.gmra.mrb[0].mxu0 %v2293
        %v2366 = vpop.f32.mrb[0].mxu0
        %v2367 = vadd.f32 %v2287, %v2366
        %v2368 = vpop.f32.mrb[0].mxu0
        %2369 = vdwg.mxu0
        %v2370 = vmul.f32 %v2362, 1.702
        %v2371 = vmul.f32 %v2367, 1.702
        %v2372 = vxor.u32 %v2370, 2147483648
        %v2373 = vxor.u32 %v2371, 2147483648
        %v2374 = vmul.f32 %v2372, 1.442695
        %v2375 = vpow.pop %v2374
        %v2376 = vmul.f32 %v2373, 1.442695
        %v2377 = vpow.pop %v2376
        %v2378 = vadd.f32 %v2375, 1.0
        %v2379 = vadd.f32 %v2377, 1.0
        %v2380 = vrcp.pop %v2378
        %v2381 = vmul.f32 1.0, %v2380
        %v2382 = vrcp.pop %v2379
        %v2383 = vmul.f32 1.0, %v2382
        %v2384 = vmul.f32 %v2362, %v2381
        %v2385 = vmul.f32 %v2367, %v2383
        %v2386 = vld [vmem:[%s634] sm:$0xff]
        %v2387 = vld [vmem:[%s634 + $0x8] sm:$0xff]
        %v2388 = vld [vmem:[%s634 + $0x10] sm:$0xff]
        %v2389 = vld [vmem:[%s634 + $0x18] sm:$0xff]
        %v2390 = vld [vmem:[%s634 + $0x20] sm:$0xff]
        %v2391 = vld [vmem:[%s634 + $0x28] sm:$0xff]
        %v2392 = vld [vmem:[%s634 + $0x30] sm:$0xff]
        %v2393 = vld [vmem:[%s634 + $0x38] sm:$0xff]
        %v2394 = vld [vmem:[%s634 + $0x40] sm:$0xff]
        %v2395 = vld [vmem:[%s634 + $0x48] sm:$0xff]
        %v2396 = vld [vmem:[%s634 + $0x50] sm:$0xff]
        %v2397 = vld [vmem:[%s634 + $0x58] sm:$0xff]
        %v2398 = vld [vmem:[%s634 + $0x60] sm:$0xff]
        %v2399 = vld [vmem:[%s634 + $0x68] sm:$0xff]
        %v2400 = vld [vmem:[%s634 + $0x70] sm:$0xff]
        %v2401 = vld [vmem:[%s634 + $0x78] sm:$0xff]
        %2402 = vmatprep.subr.mxu0 0.0
        %2403 = vmatpush1.msra.mxu0 %v2386
        %2404 = vmatprep.subr.mxu0 0.0
        %2405 = vmatpush1.msra.mxu0 %v2387
        %2406 = vmatprep.subr.mxu0 0.0
        %2407 = vmatpush1.msra.mxu0 %v2388
        %2408 = vmatprep.subr.mxu0 0.0
        %2409 = vmatpush1.msra.mxu0 %v2389
        %2410 = vmatprep.subr.mxu0 0.0
        %2411 = vmatpush1.msra.mxu0 %v2390
        %2412 = vmatprep.subr.mxu0 0.0
        %2413 = vmatpush1.msra.mxu0 %v2391
        %2414 = vmatprep.subr.mxu0 0.0
        %2415 = vmatpush1.msra.mxu0 %v2392
        %2416 = vmatprep.subr.mxu0 0.0
        %2417 = vmatpush1.msra.mxu0 %v2393
        %2418 = vmatprep.subr.mxu0 0.0
        %2419 = vmatpush1.msra.mxu0 %v2394
        %2420 = vmatprep.subr.mxu0 0.0
        %2421 = vmatpush1.msra.mxu0 %v2395
        %2422 = vmatprep.subr.mxu0 0.0
        %2423 = vmatpush1.msra.mxu0 %v2396
        %2424 = vmatprep.subr.mxu0 0.0
        %2425 = vmatpush1.msra.mxu0 %v2397
        %2426 = vmatprep.subr.mxu0 0.0
        %2427 = vmatpush1.msra.mxu0 %v2398
        %2428 = vmatprep.subr.mxu0 0.0
        %2429 = vmatpush1.msra.mxu0 %v2399
        %2430 = vmatprep.subr.mxu0 0.0
        %2431 = vmatpush1.msra.mxu0 %v2400
        %2432 = vmatprep.subr.mxu0 0.0
        %2433 = vmatpush1.msra.mxu0 %v2401
        %2434 = vmatprep.subr.mxu0 0.0
        %2435 = vmatpush1.msra.mxu0 0.0
        %2436 = vmatprep.subr.mxu0 0.0
        %2437 = vmatpush1.msra.mxu0 0.0
        %2438 = vmatprep.subr.mxu0 0.0
        %2439 = vmatpush1.msra.mxu0 0.0
        %2440 = vmatprep.subr.mxu0 0.0
        %2441 = vmatpush1.msra.mxu0 0.0
        %2442 = vmatprep.subr.mxu0 0.0
        %2443 = vmatpush1.msra.mxu0 0.0
        %2444 = vmatprep.subr.mxu0 0.0
        %2445 = vmatpush1.msra.mxu0 0.0
        %2446 = vmatprep.subr.mxu0 0.0
        %2447 = vmatpush1.msra.mxu0 0.0
        %2448 = vmatprep.subr.mxu0 0.0
        %2449 = vmatpush1.msra.mxu0 0.0
        %2450 = vmatprep.subr.mxu0 0.0
        %2451 = vmatpush1.msra.mxu0 0.0
        %2452 = vmatprep.subr.mxu0 0.0
        %2453 = vmatpush1.msra.mxu0 0.0
        %2454 = vmatprep.subr.mxu0 0.0
        %2455 = vmatpush1.msra.mxu0 0.0
        %2456 = vmatprep.subr.mxu0 0.0
        %2457 = vmatpush1.msra.mxu0 0.0
        %2458 = vmatprep.subr.mxu0 0.0
        %2459 = vmatpush1.msra.mxu0 0.0
        %2460 = vmatprep.subr.mxu0 0.0
        %2461 = vmatpush1.msra.mxu0 0.0
        %2462 = vmatprep.subr.mxu0 0.0
        %2463 = vmatpush1.msra.mxu0 0.0
        %2464 = vmatprep.subr.mxu0 0.0
        %2465 = vmatpush1.msra.mxu0 0.0
        %2466 = vmatprep.mubr.f32.mxu0 0.0
        %2467 = vmatmul.mubr.f32.gmra.mrb[0].mxu0 %v2384
        %v2468 = vpop.f32.mrb[0].mxu0
        %v2469 = vadd.f32 0.0, %v2468
        %v2470 = vpop.f32.mrb[0].mxu0
        %2471 = vmatprep.mubr.f32.mxu0 0.0
        %2472 = vmatmul.mubr.f32.gmra.mrb[0].mxu0 %v2385
        %v2473 = vpop.f32.mrb[0].mxu0
        %v2474 = vadd.f32 0.0, %v2473
        %v2475 = vpop.f32.mrb[0].mxu0
        %2476 = vdwg.mxu0
        %v2477 = vadd.f32 %v2234, %v2469
        %v2478 = vadd.f32 %v2235, %v2474
        %v2480 = vlaneseq
        %v2481 = vshrl.u32 %v2480, 7
        %v2482 = vsub.s32 0, %v2481
        %v2483 = vrot.slane %v656, %v2482
        %v2485 = vadd.f32 %v2477, %v2483
        %v2486 = vadd.f32 %v2478, %v2483
        %2487 = vst.msk [vmem:[#allocation2] sm:$0xff] %vm657, %v2485
        %2488 = vst.msk [vmem:[#allocation2 + $0x8] sm:$0xff] %vm657, %v2486
        %p2489 = scmp.eq.s32.totalorder %s30, 1
        // Predicated region
        $region77: #{tpu_custom_call.1} parent=71 // pred_check
          %p2490 = pneg %p2489
        $region78: #{tpu_custom_call.1} parent=71 // pred_check_branch
          %2492 = sbr.rel (%p2490) target = $region80
        $region79: #{tpu_custom_call.1} parent=71 // pred_region
          %2493 = vst.msk [vmem:[#allocation3] sm:$0xff] %vm657, %v2485
          %2494 = vst.msk [vmem:[#allocation3 + $0x8] sm:$0xff] %vm657, %v2486
        $region80: #{tpu_custom_call.1} parent=71 // pred_fallthru
          _
        // Predicated region
        $region81: #{tpu_custom_call.1} parent=71 // pred_check
          %p2495 = pneg %p393
        $region82: #{tpu_custom_call.1} parent=71 // pred_check_branch
          %2497 = sbr.rel (%p2495) target = $region84
        $region83: #{tpu_custom_call.1} parent=71 // pred_region
          %s2498 = smul.u32 2, %s29
          %s2500 = ssub.s32 256, 256
          %2501 = vsyncadd [#allocation4], %s2500
          %s2502 = smul.addr %s2498, 128
          %s2503 = scalar_lea.hbm %s13, %s2502
          %s2504 = sshll.u32 [#allocation3], 4
          %s2505 = int_to_ptr.vmem [resolvable:$true] %s2504
          %2510 = dma.vmem_to_hbm [thread:$0]  %s2505, 256, %s2503, [#allocation4], 128, 128, 8
        $region84: #{tpu_custom_call.1} parent=71 // pred_fallthru
          _
        // Predicated region
        $region85: #{tpu_custom_call.1} parent=71 // pred_check
          %p2511 = pneg %p393
        $region86: #{tpu_custom_call.1} parent=71 // pred_check_branch
          %2513 = sbr.rel (%p2511) target = $region88
        $region87: #{tpu_custom_call.1} parent=71 // pred_region
          %2514 = dma.done [#allocation4], 256
        $region88: #{tpu_custom_call.1} parent=71 // pred_fallthru
          _
      $region72: #{tpu_custom_call.1} parent=5 // pred_fallthru
        _
      %p2515 = scmp.le.s32.totalorder 2, %s20
      // Predicated region
      $region89: #{tpu_custom_call.1} parent=5 // pred_check
        %p2516 = pneg %p2515
      $region90: #{tpu_custom_call.1} parent=5 // pred_check_branch
        %2518 = sbr.rel (%p2516) target = $region92
      $region91: #{tpu_custom_call.1} parent=5 // pred_region
        %s2519 = ssub.s32 %s20, 2
      $region92: #{tpu_custom_call.1} parent=5 // pred_fallthru
        _
    $region6: #{tpu_custom_call.1} parent=1 // loop_footer
      %s24 = sadd.s32 1, %s20
    $region7: #{tpu_custom_call.1} parent=1 // loop_footer_branch
      %19 = sbr.rel target = $region3
    $region8: #{tpu_custom_call.1} parent=1 // loop_exit
      _
    %2520 = vsyncpa [#allocation4], 1
    %s2521 = scalar_lea.sflag [#allocation4], 1
    %2522 = vsyncpa %s2521, 1

</llo_original>
